<compile_context>
chip_gen: v7x
topology: tpu7x:2x2x1
jax: 0.10.0
libtpu: 0.0.40
codegen_flags: <defaults>
</compile_context>

<pallas_src>
import functools

import jax
import jax.numpy as jnp
from jax.experimental import pallas as pl
from jax.experimental.pallas import tpu as pltpu

VOCAB = 32      # stands in for weigh.shape[0]
EMB = 256
HID = 128
FC1 = 64
FC1_PAD = 128   # lane-dense FC hidden width; real features are [:, :FC1]
NCLS = 2
OUT_PAD = 128   # lane-dense output width; real classes are [:, :NCLS]
BN_EPS = 1e-5


def _supports_bf16_gate_activations():
    # bf16 EUP/VPU paths exist on v6e/v7x; v5e and older have none (casts only
    # add work there), so fall back to f32 gate nonlinearities.
    try:
        kind = jax.devices()[0].device_kind.lower()
    except Exception:
        return False
    return any(tag in kind for tag in ("v6", "v7", "7x"))


def _sigmoid_eup(x):
    # sigmoid(x) = 1 / (1 + exp(-x)): exp on the EUP, approximate reciprocal on
    # the EUP -> no VPU divide on the serial per-step chain.  Returns f32.
    denom = (1.0 + jnp.exp(-x)).astype(jnp.float32)
    return pl.reciprocal(denom, approx=True)


# --------------------- fused LSTM recurrence + FC head -----------------------
def fused_lstm_fc_kernel(gx_ref, whh_ref, w1_ref, b1_ref, gamma_ref, beta_ref,
                         w2_ref, b2_ref, o_ref, *, bf16_gates):
    B = o_ref.shape[0]
    T = gx_ref.shape[0]
    gate_dtype = jnp.bfloat16 if bf16_gates else jnp.float32

    # Serial recurrence: only h @ W_hh (+ gate math) per step; the gate
    # pre-activations (input projection + both biases) come from gx_ref[t].
    def step(t, carry):
        h, c = carry
        gates = (gx_ref[t].astype(jnp.float32)
                 + jnp.dot(h.astype(jnp.bfloat16), whh_ref[...],
                           preferred_element_type=jnp.float32))   # (B, 4*HID)
        acts = gates.astype(gate_dtype)
        # Gate columns were pre-permuted to [i, f, o | g]:
        ifo = _sigmoid_eup(acts[:, :3 * HID])                     # (B, 3*HID)
        g = jnp.tanh(acts[:, 3 * HID:]).astype(jnp.float32)       # (B, HID)
        i = ifo[:, 0 * HID:1 * HID]
        f = ifo[:, 1 * HID:2 * HID]
        o = ifo[:, 2 * HID:3 * HID]
        c = f * c + i * g
        h = o * jnp.tanh(c)
        return h, c

    h0 = jnp.zeros((B, HID), jnp.float32)
    c0 = jnp.zeros((B, HID), jnp.float32)
    unroll = True if T <= 16 else 8          # T-aware unroll
    h, _ = jax.lax.fori_loop(0, T, step, (h0, c0), unroll=unroll)
    # TODO(synk): the per-step M=8 matmul could keep W_hh MXU-resident via
    # pltpu.matmul_push_rhs/matmul_acc_lhs/matmul_pop; kept as jnp.dot here for
    # portability across v5e/v6e/v7x.
    # TODO(synk): a batch-parallel grid axis (v7x, B>=16) conflicts with the
    # in-kernel full-batch BatchNorm; would need a cross-core reduction.

    # FC head on output[:, -1, :] == h.  Everything is padded to 128 lanes;
    # padded W1 columns / gamma / beta / W2 rows are zero, so results in the
    # real [:FC1] / [:NCLS] columns are exact.
    h1 = jnp.dot(h, w1_ref[...], preferred_element_type=jnp.float32) + b1_ref[...]
    h1 = jnp.maximum(h1, 0.0)                                   # ReLU
    mean = jnp.mean(h1, axis=0, keepdims=True)                  # BatchNorm1d (train)
    var = jnp.mean(jnp.square(h1 - mean), axis=0, keepdims=True)  # biased variance
    h1n = gamma_ref[...] * (h1 - mean) * jax.lax.rsqrt(var + BN_EPS) + beta_ref[...]
    logits = (jnp.dot(h1n, w2_ref[...], preferred_element_type=jnp.float32)
              + b2_ref[...])                                    # (B, OUT_PAD)
    o_ref[...] = jax.nn.sigmoid(logits)


def run_fused(gx, whh, w1p, b1p, gammap, betap, w2p, b2p, B, T, bf16_gates):
    kernel = functools.partial(fused_lstm_fc_kernel, bf16_gates=bf16_gates)
    return pl.pallas_call(
        kernel,
        out_shape=jax.ShapeDtypeStruct((B, OUT_PAD), jnp.float32),
        grid_spec=pltpu.PrefetchScalarGridSpec(
            num_scalar_prefetch=0,
            grid=(1,),
            in_specs=[
                pl.BlockSpec((T, B, 4 * HID), lambda i: (0, 0, 0)),   # gx (bf16)
                pl.BlockSpec((HID, 4 * HID), lambda i: (0, 0)),       # W_hh^T (bf16)
                pl.BlockSpec((HID, FC1_PAD), lambda i: (0, 0)),       # W1^T (padded)
                pl.BlockSpec((1, FC1_PAD), lambda i: (0, 0)),         # b1 (padded)
                pl.BlockSpec((1, FC1_PAD), lambda i: (0, 0)),         # gamma (padded)
                pl.BlockSpec((1, FC1_PAD), lambda i: (0, 0)),         # beta (padded)
                pl.BlockSpec((FC1_PAD, OUT_PAD), lambda i: (0, 0)),   # W2^T (padded)
                pl.BlockSpec((1, OUT_PAD), lambda i: (0, 0)),         # b2 (padded)
            ],
            out_specs=pl.BlockSpec((B, OUT_PAD), lambda i: (0, 0)),
        ),
        compiler_params=pltpu.CompilerParams(
            dimension_semantics=("arbitrary",),
            vmem_limit_bytes=40 * 1024 * 1024,   # v5e scoped default is 16 MiB
        ),
    )(gx, whh, w1p, b1p, gammap, betap, w2p, b2p)


# ------------------------------ full forward ---------------------------------
def _permute_gate_cols(w):
    # PyTorch nn.LSTM packs gates [i, f, g, o] along the 4H axis; re-pack to
    # [i, f, o, g] so the three sigmoid gates are one contiguous 3*HID slice.
    i, f, g, o = jnp.split(w, 4, axis=-1)
    return jnp.concatenate([i, f, o, g], axis=-1)


def lstm_module_forward(tokens, x_lens, params, *, bf16_gates):
    # x_lens unused: the reference forward never packs/masks by length.
    del x_lens
    B, T = tokens.shape

    # VOCAB=32 table trick: the whole input projection (+ b_ih + b_hh) is a
    # (VOCAB, 4*HID) table computed in f32; per-token gate pre-activations are
    # a gather.  tokens.T makes the layout time-major: gx[t] is timestep t.
    w_ih_T = _permute_gate_cols(params["w_ih_T"])
    b_lstm = _permute_gate_cols(params["b_lstm"])
    gate_table = jnp.dot(params["embedding"], w_ih_T,
                         preferred_element_type=jnp.float32) + b_lstm
    gx = jnp.take(gate_table, tokens.T, axis=0).astype(jnp.bfloat16)  # (T,B,4H)

    whh = _permute_gate_cols(params["w_hh_T"]).astype(jnp.bfloat16)

    # Lane-dense FC head: zero-pad FC1 64->128 and classes 2->128.  Zero pads
    # (W1 cols, b1, gamma, beta, W2 rows/cols, b2) keep the real outputs exact.
    w1p = jnp.pad(params["w1_T"], ((0, 0), (0, FC1_PAD - FC1)))
    b1p = jnp.pad(params["b1"], ((0, 0), (0, FC1_PAD - FC1)))
    gammap = jnp.pad(params["gamma"], ((0, 0), (0, FC1_PAD - FC1)))
    betap = jnp.pad(params["beta"], ((0, 0), (0, FC1_PAD - FC1)))
    w2p = jnp.pad(params["w2_T"], ((0, FC1_PAD - FC1), (0, OUT_PAD - NCLS)))
    b2p = jnp.pad(params["b2"], ((0, 0), (0, OUT_PAD - NCLS)))

    out_padded = run_fused(gx, whh, w1p, b1p, gammap, betap, w2p, b2p,
                           B, T, bf16_gates)
    return out_padded[:, :NCLS]                                   # (B, 2)


def make_params(key):
    ks = jax.random.split(key, 8)
    s = 0.05
    return {
        "embedding": jax.random.normal(ks[0], (VOCAB, EMB), jnp.float32) * s,
        # PyTorch stores W_ih (4H, E) / W_hh (4H, H) in gate order [i,f,g,o];
        # pre-transposed here for x @ W^T.  W_ih stays f32 (it only feeds the
        # offline gate table); W_hh is cast to bf16 for the in-kernel MXU.
        "w_ih_T": jax.random.normal(ks[1], (EMB, 4 * HID), jnp.float32) * s,
        "w_hh_T": jax.random.normal(ks[2], (HID, 4 * HID), jnp.float32) * s,
        # b_ih + b_hh folded into one bias (itself folded into the gate table).
        "b_lstm": jax.random.normal(ks[3], (1, 4 * HID), jnp.float32) * s,
        "w1_T": jax.random.normal(ks[4], (HID, FC1), jnp.float32) * s,
        "b1": jax.random.normal(ks[5], (1, FC1), jnp.float32) * s,
        "gamma": jnp.ones((1, FC1), jnp.float32),
        "beta": jnp.zeros((1, FC1), jnp.float32),
        "w2_T": jax.random.normal(ks[6], (FC1, NCLS), jnp.float32) * s,
        "b2": jax.random.normal(ks[7], (1, NCLS), jnp.float32) * s,
    }
    # TODO(synk): nn.LSTM dropout=0.37 is a no-op with num_layers=1 (PyTorch
    # only applies inter-layer dropout), so it is intentionally omitted.
    # TODO(synk): BatchNorm uses current-batch statistics (training mode); eval
    # parity would need running_mean/var inputs.


if __name__ == "__main__":
    B, T = 8, 8
    key = jax.random.PRNGKey(0)
    k_tok, k_len, k_par = jax.random.split(key, 3)
    tokens = jax.random.randint(k_tok, (B, T), 0, VOCAB, dtype=jnp.int32)
    x_lens = jax.random.randint(k_len, (B,), 1, T + 1, dtype=jnp.int32)
    params = make_params(k_par)

    bf16_gates = _supports_bf16_gate_activations()
    fwd = jax.jit(functools.partial(lstm_module_forward, bf16_gates=bf16_gates))
    out = jax.block_until_ready(fwd(tokens, x_lens, params))
    assert out.shape == (B, NCLS) and out.dtype == jnp.float32
    assert bool(jnp.all(jnp.isfinite(out))) and bool(jnp.all((out >= 0) & (out <= 1)))
    print("KERNEL_OK")
</pallas_src>

<mosaic_0001>
module attributes {stable_mosaic.version = 11 : i64} {
  func.func @fused_lstm_fc_kernel(%arg0: i32, %arg1: memref<8x8x512xbf16, #tpu.memory_space<vmem>>, %arg2: memref<128x512xbf16, #tpu.memory_space<vmem>>, %arg3: memref<128x128xf32, #tpu.memory_space<vmem>>, %arg4: memref<1x128xf32, #tpu.memory_space<vmem>>, %arg5: memref<1x128xf32, #tpu.memory_space<vmem>>, %arg6: memref<1x128xf32, #tpu.memory_space<vmem>>, %arg7: memref<128x128xf32, #tpu.memory_space<vmem>>, %arg8: memref<1x128xf32, #tpu.memory_space<vmem>>, %arg9: memref<8x128xf32, #tpu.memory_space<vmem>>) attributes {dimension_semantics = [#tpu.dimension_semantics<arbitrary>], iteration_bounds = array<i64: 1>, scalar_prefetch = 0 : i64, scratch_operands = 0 : i64, tpu.core_type = #tpu.core_type<tc>, window_params = [{pipeline_mode = #tpu.pipeline_mode<synchronous>, transform_indices = @transform_0, window_bounds = array<i64: 8, 8, 512>}, {pipeline_mode = #tpu.pipeline_mode<synchronous>, transform_indices = @transform_1, window_bounds = array<i64: 128, 512>}, {pipeline_mode = #tpu.pipeline_mode<synchronous>, transform_indices = @transform_2, window_bounds = array<i64: 128, 128>}, {pipeline_mode = #tpu.pipeline_mode<synchronous>, transform_indices = @transform_3, window_bounds = array<i64: 1, 128>}, {pipeline_mode = #tpu.pipeline_mode<synchronous>, transform_indices = @transform_4, window_bounds = array<i64: 1, 128>}, {pipeline_mode = #tpu.pipeline_mode<synchronous>, transform_indices = @transform_5, window_bounds = array<i64: 1, 128>}, {pipeline_mode = #tpu.pipeline_mode<synchronous>, transform_indices = @transform_6, window_bounds = array<i64: 128, 128>}, {pipeline_mode = #tpu.pipeline_mode<synchronous>, transform_indices = @transform_7, window_bounds = array<i64: 1, 128>}, {pipeline_mode = #tpu.pipeline_mode<synchronous>, transform_indices = @transform_8, window_bounds = array<i64: 8, 128>}]} {
    %cst = arith.constant 0.000000e+00 : f32
    %0 = vector.broadcast %cst : f32 to vector<8x128xf32>
    %cst_0 = arith.constant 0.000000e+00 : f32
    %1 = vector.broadcast %cst_0 : f32 to vector<8x128xf32>
    %c0_i32 = arith.constant 0 : i32
    %2 = arith.index_cast %c0_i32 : i32 to index
    %c0 = arith.constant 0 : index
    %c0_1 = arith.constant 0 : index
    %3 = vector.load %arg1[%2, %c0, %c0_1] : memref<8x8x512xbf16, #tpu.memory_space<vmem>>, vector<1x8x512xbf16>
    %4 = vector.shape_cast %3 : vector<1x8x512xbf16> to vector<8x512xbf16>
    %5 = arith.extf %4 : vector<8x512xbf16> to vector<8x512xf32>
    %6 = arith.truncf %0 : vector<8x128xf32> to vector<8x128xbf16>
    %c0_2 = arith.constant 0 : index
    %c0_3 = arith.constant 0 : index
    %7 = vector.load %arg2[%c0_2, %c0_3] : memref<128x512xbf16, #tpu.memory_space<vmem>>, vector<128x512xbf16>
    %cst_4 = arith.constant dense<0.000000e+00> : vector<8x512xf32>
    %8 = tpu.matmul %6, %7, %cst_4 {dimension_numbers = #tpu.dot_dimension_numbers<[1], [0], [0], [1], [0, 0, 1, 1], [], []>} : vector<8x128xbf16>, vector<128x512xbf16>, vector<8x512xf32> -> vector<8x512xf32>
    %9 = arith.addf %5, %8 : vector<8x512xf32>
    %10 = vector.extract_strided_slice %9 {offsets = [0, 0], sizes = [8, 384], strides = [1, 1]} : vector<8x512xf32> to vector<8x384xf32>
    %cst_5 = arith.constant 0.000000e+00 : f32
    %11 = vector.broadcast %cst_5 : f32 to vector<8x384xf32>
    %12 = arith.subf %11, %10 : vector<8x384xf32>
    %13 = math.exp %12 : vector<8x384xf32>
    %cst_6 = arith.constant 1.000000e+00 : f32
    %14 = vector.broadcast %cst_6 : f32 to vector<8x384xf32>
    %15 = arith.addf %14, %13 : vector<8x384xf32>
    %16 = tpu.reciprocal %15 {approx = true} : vector<8x384xf32> -> vector<8x384xf32>
    %17 = vector.extract_strided_slice %9 {offsets = [0, 384], sizes = [8, 128], strides = [1, 1]} : vector<8x512xf32> to vector<8x128xf32>
    %18 = math.tanh %17 : vector<8x128xf32>
    %19 = vector.extract_strided_slice %16 {offsets = [0, 0], sizes = [8, 128], strides = [1, 1]} : vector<8x384xf32> to vector<8x128xf32>
    %20 = vector.extract_strided_slice %16 {offsets = [0, 128], sizes = [8, 128], strides = [1, 1]} : vector<8x384xf32> to vector<8x128xf32>
    %21 = vector.extract_strided_slice %16 {offsets = [0, 256], sizes = [8, 128], strides = [1, 1]} : vector<8x384xf32> to vector<8x128xf32>
    %22 = arith.mulf %20, %1 : vector<8x128xf32>
    %23 = arith.mulf %19, %18 : vector<8x128xf32>
    %24 = arith.addf %22, %23 : vector<8x128xf32>
    %25 = math.tanh %24 : vector<8x128xf32>
    %26 = arith.mulf %21, %25 : vector<8x128xf32>
    %c1_i32 = arith.constant 1 : i32
    %27 = arith.index_cast %c1_i32 : i32 to index
    %c0_7 = arith.constant 0 : index
    %c0_8 = arith.constant 0 : index
    %28 = vector.load %arg1[%27, %c0_7, %c0_8] : memref<8x8x512xbf16, #tpu.memory_space<vmem>>, vector<1x8x512xbf16>
    %29 = vector.shape_cast %28 : vector<1x8x512xbf16> to vector<8x512xbf16>
    %30 = arith.extf %29 : vector<8x512xbf16> to vector<8x512xf32>
    %31 = arith.truncf %26 : vector<8x128xf32> to vector<8x128xbf16>
    %c0_9 = arith.constant 0 : index
    %c0_10 = arith.constant 0 : index
    %32 = vector.load %arg2[%c0_9, %c0_10] : memref<128x512xbf16, #tpu.memory_space<vmem>>, vector<128x512xbf16>
    %cst_11 = arith.constant dense<0.000000e+00> : vector<8x512xf32>
    %33 = tpu.matmul %31, %32, %cst_11 {dimension_numbers = #tpu.dot_dimension_numbers<[1], [0], [0], [1], [0, 0, 1, 1], [], []>} : vector<8x128xbf16>, vector<128x512xbf16>, vector<8x512xf32> -> vector<8x512xf32>
    %34 = arith.addf %30, %33 : vector<8x512xf32>
    %35 = vector.extract_strided_slice %34 {offsets = [0, 0], sizes = [8, 384], strides = [1, 1]} : vector<8x512xf32> to vector<8x384xf32>
    %cst_12 = arith.constant 0.000000e+00 : f32
    %36 = vector.broadcast %cst_12 : f32 to vector<8x384xf32>
    %37 = arith.subf %36, %35 : vector<8x384xf32>
    %38 = math.exp %37 : vector<8x384xf32>
    %cst_13 = arith.constant 1.000000e+00 : f32
    %39 = vector.broadcast %cst_13 : f32 to vector<8x384xf32>
    %40 = arith.addf %39, %38 : vector<8x384xf32>
    %41 = tpu.reciprocal %40 {approx = true} : vector<8x384xf32> -> vector<8x384xf32>
    %42 = vector.extract_strided_slice %34 {offsets = [0, 384], sizes = [8, 128], strides = [1, 1]} : vector<8x512xf32> to vector<8x128xf32>
    %43 = math.tanh %42 : vector<8x128xf32>
    %44 = vector.extract_strided_slice %41 {offsets = [0, 0], sizes = [8, 128], strides = [1, 1]} : vector<8x384xf32> to vector<8x128xf32>
    %45 = vector.extract_strided_slice %41 {offsets = [0, 128], sizes = [8, 128], strides = [1, 1]} : vector<8x384xf32> to vector<8x128xf32>
    %46 = vector.extract_strided_slice %41 {offsets = [0, 256], sizes = [8, 128], strides = [1, 1]} : vector<8x384xf32> to vector<8x128xf32>
    %47 = arith.mulf %45, %24 : vector<8x128xf32>
    %48 = arith.mulf %44, %43 : vector<8x128xf32>
    %49 = arith.addf %47, %48 : vector<8x128xf32>
    %50 = math.tanh %49 : vector<8x128xf32>
    %51 = arith.mulf %46, %50 : vector<8x128xf32>
    %c2_i32 = arith.constant 2 : i32
    %52 = arith.index_cast %c2_i32 : i32 to index
    %c0_14 = arith.constant 0 : index
    %c0_15 = arith.constant 0 : index
    %53 = vector.load %arg1[%52, %c0_14, %c0_15] : memref<8x8x512xbf16, #tpu.memory_space<vmem>>, vector<1x8x512xbf16>
    %54 = vector.shape_cast %53 : vector<1x8x512xbf16> to vector<8x512xbf16>
    %55 = arith.extf %54 : vector<8x512xbf16> to vector<8x512xf32>
    %56 = arith.truncf %51 : vector<8x128xf32> to vector<8x128xbf16>
    %c0_16 = arith.constant 0 : index
    %c0_17 = arith.constant 0 : index
    %57 = vector.load %arg2[%c0_16, %c0_17] : memref<128x512xbf16, #tpu.memory_space<vmem>>, vector<128x512xbf16>
    %cst_18 = arith.constant dense<0.000000e+00> : vector<8x512xf32>
    %58 = tpu.matmul %56, %57, %cst_18 {dimension_numbers = #tpu.dot_dimension_numbers<[1], [0], [0], [1], [0, 0, 1, 1], [], []>} : vector<8x128xbf16>, vector<128x512xbf16>, vector<8x512xf32> -> vector<8x512xf32>
    %59 = arith.addf %55, %58 : vector<8x512xf32>
    %60 = vector.extract_strided_slice %59 {offsets = [0, 0], sizes = [8, 384], strides = [1, 1]} : vector<8x512xf32> to vector<8x384xf32>
    %cst_19 = arith.constant 0.000000e+00 : f32
    %61 = vector.broadcast %cst_19 : f32 to vector<8x384xf32>
    %62 = arith.subf %61, %60 : vector<8x384xf32>
    %63 = math.exp %62 : vector<8x384xf32>
    %cst_20 = arith.constant 1.000000e+00 : f32
    %64 = vector.broadcast %cst_20 : f32 to vector<8x384xf32>
    %65 = arith.addf %64, %63 : vector<8x384xf32>
    %66 = tpu.reciprocal %65 {approx = true} : vector<8x384xf32> -> vector<8x384xf32>
    %67 = vector.extract_strided_slice %59 {offsets = [0, 384], sizes = [8, 128], strides = [1, 1]} : vector<8x512xf32> to vector<8x128xf32>
    %68 = math.tanh %67 : vector<8x128xf32>
    %69 = vector.extract_strided_slice %66 {offsets = [0, 0], sizes = [8, 128], strides = [1, 1]} : vector<8x384xf32> to vector<8x128xf32>
    %70 = vector.extract_strided_slice %66 {offsets = [0, 128], sizes = [8, 128], strides = [1, 1]} : vector<8x384xf32> to vector<8x128xf32>
    %71 = vector.extract_strided_slice %66 {offsets = [0, 256], sizes = [8, 128], strides = [1, 1]} : vector<8x384xf32> to vector<8x128xf32>
    %72 = arith.mulf %70, %49 : vector<8x128xf32>
    %73 = arith.mulf %69, %68 : vector<8x128xf32>
    %74 = arith.addf %72, %73 : vector<8x128xf32>
    %75 = math.tanh %74 : vector<8x128xf32>
    %76 = arith.mulf %71, %75 : vector<8x128xf32>
    %c3_i32 = arith.constant 3 : i32
    %77 = arith.index_cast %c3_i32 : i32 to index
    %c0_21 = arith.constant 0 : index
    %c0_22 = arith.constant 0 : index
    %78 = vector.load %arg1[%77, %c0_21, %c0_22] : memref<8x8x512xbf16, #tpu.memory_space<vmem>>, vector<1x8x512xbf16>
    %79 = vector.shape_cast %78 : vector<1x8x512xbf16> to vector<8x512xbf16>
    %80 = arith.extf %79 : vector<8x512xbf16> to vector<8x512xf32>
    %81 = arith.truncf %76 : vector<8x128xf32> to vector<8x128xbf16>
    %c0_23 = arith.constant 0 : index
    %c0_24 = arith.constant 0 : index
    %82 = vector.load %arg2[%c0_23, %c0_24] : memref<128x512xbf16, #tpu.memory_space<vmem>>, vector<128x512xbf16>
    %cst_25 = arith.constant dense<0.000000e+00> : vector<8x512xf32>
    %83 = tpu.matmul %81, %82, %cst_25 {dimension_numbers = #tpu.dot_dimension_numbers<[1], [0], [0], [1], [0, 0, 1, 1], [], []>} : vector<8x128xbf16>, vector<128x512xbf16>, vector<8x512xf32> -> vector<8x512xf32>
    %84 = arith.addf %80, %83 : vector<8x512xf32>
    %85 = vector.extract_strided_slice %84 {offsets = [0, 0], sizes = [8, 384], strides = [1, 1]} : vector<8x512xf32> to vector<8x384xf32>
    %cst_26 = arith.constant 0.000000e+00 : f32
    %86 = vector.broadcast %cst_26 : f32 to vector<8x384xf32>
    %87 = arith.subf %86, %85 : vector<8x384xf32>
    %88 = math.exp %87 : vector<8x384xf32>
    %cst_27 = arith.constant 1.000000e+00 : f32
    %89 = vector.broadcast %cst_27 : f32 to vector<8x384xf32>
    %90 = arith.addf %89, %88 : vector<8x384xf32>
    %91 = tpu.reciprocal %90 {approx = true} : vector<8x384xf32> -> vector<8x384xf32>
    %92 = vector.extract_strided_slice %84 {offsets = [0, 384], sizes = [8, 128], strides = [1, 1]} : vector<8x512xf32> to vector<8x128xf32>
    %93 = math.tanh %92 : vector<8x128xf32>
    %94 = vector.extract_strided_slice %91 {offsets = [0, 0], sizes = [8, 128], strides = [1, 1]} : vector<8x384xf32> to vector<8x128xf32>
    %95 = vector.extract_strided_slice %91 {offsets = [0, 128], sizes = [8, 128], strides = [1, 1]} : vector<8x384xf32> to vector<8x128xf32>
    %96 = vector.extract_strided_slice %91 {offsets = [0, 256], sizes = [8, 128], strides = [1, 1]} : vector<8x384xf32> to vector<8x128xf32>
    %97 = arith.mulf %95, %74 : vector<8x128xf32>
    %98 = arith.mulf %94, %93 : vector<8x128xf32>
    %99 = arith.addf %97, %98 : vector<8x128xf32>
    %100 = math.tanh %99 : vector<8x128xf32>
    %101 = arith.mulf %96, %100 : vector<8x128xf32>
    %c4_i32 = arith.constant 4 : i32
    %102 = arith.index_cast %c4_i32 : i32 to index
    %c0_28 = arith.constant 0 : index
    %c0_29 = arith.constant 0 : index
    %103 = vector.load %arg1[%102, %c0_28, %c0_29] : memref<8x8x512xbf16, #tpu.memory_space<vmem>>, vector<1x8x512xbf16>
    %104 = vector.shape_cast %103 : vector<1x8x512xbf16> to vector<8x512xbf16>
    %105 = arith.extf %104 : vector<8x512xbf16> to vector<8x512xf32>
    %106 = arith.truncf %101 : vector<8x128xf32> to vector<8x128xbf16>
    %c0_30 = arith.constant 0 : index
    %c0_31 = arith.constant 0 : index
    %107 = vector.load %arg2[%c0_30, %c0_31] : memref<128x512xbf16, #tpu.memory_space<vmem>>, vector<128x512xbf16>
    %cst_32 = arith.constant dense<0.000000e+00> : vector<8x512xf32>
    %108 = tpu.matmul %106, %107, %cst_32 {dimension_numbers = #tpu.dot_dimension_numbers<[1], [0], [0], [1], [0, 0, 1, 1], [], []>} : vector<8x128xbf16>, vector<128x512xbf16>, vector<8x512xf32> -> vector<8x512xf32>
    %109 = arith.addf %105, %108 : vector<8x512xf32>
    %110 = vector.extract_strided_slice %109 {offsets = [0, 0], sizes = [8, 384], strides = [1, 1]} : vector<8x512xf32> to vector<8x384xf32>
    %cst_33 = arith.constant 0.000000e+00 : f32
    %111 = vector.broadcast %cst_33 : f32 to vector<8x384xf32>
    %112 = arith.subf %111, %110 : vector<8x384xf32>
    %113 = math.exp %112 : vector<8x384xf32>
    %cst_34 = arith.constant 1.000000e+00 : f32
    %114 = vector.broadcast %cst_34 : f32 to vector<8x384xf32>
    %115 = arith.addf %114, %113 : vector<8x384xf32>
    %116 = tpu.reciprocal %115 {approx = true} : vector<8x384xf32> -> vector<8x384xf32>
    %117 = vector.extract_strided_slice %109 {offsets = [0, 384], sizes = [8, 128], strides = [1, 1]} : vector<8x512xf32> to vector<8x128xf32>
    %118 = math.tanh %117 : vector<8x128xf32>
    %119 = vector.extract_strided_slice %116 {offsets = [0, 0], sizes = [8, 128], strides = [1, 1]} : vector<8x384xf32> to vector<8x128xf32>
    %120 = vector.extract_strided_slice %116 {offsets = [0, 128], sizes = [8, 128], strides = [1, 1]} : vector<8x384xf32> to vector<8x128xf32>
    %121 = vector.extract_strided_slice %116 {offsets = [0, 256], sizes = [8, 128], strides = [1, 1]} : vector<8x384xf32> to vector<8x128xf32>
    %122 = arith.mulf %120, %99 : vector<8x128xf32>
    %123 = arith.mulf %119, %118 : vector<8x128xf32>
    %124 = arith.addf %122, %123 : vector<8x128xf32>
    %125 = math.tanh %124 : vector<8x128xf32>
    %126 = arith.mulf %121, %125 : vector<8x128xf32>
    %c5_i32 = arith.constant 5 : i32
    %127 = arith.index_cast %c5_i32 : i32 to index
    %c0_35 = arith.constant 0 : index
    %c0_36 = arith.constant 0 : index
    %128 = vector.load %arg1[%127, %c0_35, %c0_36] : memref<8x8x512xbf16, #tpu.memory_space<vmem>>, vector<1x8x512xbf16>
    %129 = vector.shape_cast %128 : vector<1x8x512xbf16> to vector<8x512xbf16>
    %130 = arith.extf %129 : vector<8x512xbf16> to vector<8x512xf32>
    %131 = arith.truncf %126 : vector<8x128xf32> to vector<8x128xbf16>
    %c0_37 = arith.constant 0 : index
    %c0_38 = arith.constant 0 : index
    %132 = vector.load %arg2[%c0_37, %c0_38] : memref<128x512xbf16, #tpu.memory_space<vmem>>, vector<128x512xbf16>
    %cst_39 = arith.constant dense<0.000000e+00> : vector<8x512xf32>
    %133 = tpu.matmul %131, %132, %cst_39 {dimension_numbers = #tpu.dot_dimension_numbers<[1], [0], [0], [1], [0, 0, 1, 1], [], []>} : vector<8x128xbf16>, vector<128x512xbf16>, vector<8x512xf32> -> vector<8x512xf32>
    %134 = arith.addf %130, %133 : vector<8x512xf32>
    %135 = vector.extract_strided_slice %134 {offsets = [0, 0], sizes = [8, 384], strides = [1, 1]} : vector<8x512xf32> to vector<8x384xf32>
    %cst_40 = arith.constant 0.000000e+00 : f32
    %136 = vector.broadcast %cst_40 : f32 to vector<8x384xf32>
    %137 = arith.subf %136, %135 : vector<8x384xf32>
    %138 = math.exp %137 : vector<8x384xf32>
    %cst_41 = arith.constant 1.000000e+00 : f32
    %139 = vector.broadcast %cst_41 : f32 to vector<8x384xf32>
    %140 = arith.addf %139, %138 : vector<8x384xf32>
    %141 = tpu.reciprocal %140 {approx = true} : vector<8x384xf32> -> vector<8x384xf32>
    %142 = vector.extract_strided_slice %134 {offsets = [0, 384], sizes = [8, 128], strides = [1, 1]} : vector<8x512xf32> to vector<8x128xf32>
    %143 = math.tanh %142 : vector<8x128xf32>
    %144 = vector.extract_strided_slice %141 {offsets = [0, 0], sizes = [8, 128], strides = [1, 1]} : vector<8x384xf32> to vector<8x128xf32>
    %145 = vector.extract_strided_slice %141 {offsets = [0, 128], sizes = [8, 128], strides = [1, 1]} : vector<8x384xf32> to vector<8x128xf32>
    %146 = vector.extract_strided_slice %141 {offsets = [0, 256], sizes = [8, 128], strides = [1, 1]} : vector<8x384xf32> to vector<8x128xf32>
    %147 = arith.mulf %145, %124 : vector<8x128xf32>
    %148 = arith.mulf %144, %143 : vector<8x128xf32>
    %149 = arith.addf %147, %148 : vector<8x128xf32>
    %150 = math.tanh %149 : vector<8x128xf32>
    %151 = arith.mulf %146, %150 : vector<8x128xf32>
    %c6_i32 = arith.constant 6 : i32
    %152 = arith.index_cast %c6_i32 : i32 to index
    %c0_42 = arith.constant 0 : index
    %c0_43 = arith.constant 0 : index
    %153 = vector.load %arg1[%152, %c0_42, %c0_43] : memref<8x8x512xbf16, #tpu.memory_space<vmem>>, vector<1x8x512xbf16>
    %154 = vector.shape_cast %153 : vector<1x8x512xbf16> to vector<8x512xbf16>
    %155 = arith.extf %154 : vector<8x512xbf16> to vector<8x512xf32>
    %156 = arith.truncf %151 : vector<8x128xf32> to vector<8x128xbf16>
    %c0_44 = arith.constant 0 : index
    %c0_45 = arith.constant 0 : index
    %157 = vector.load %arg2[%c0_44, %c0_45] : memref<128x512xbf16, #tpu.memory_space<vmem>>, vector<128x512xbf16>
    %cst_46 = arith.constant dense<0.000000e+00> : vector<8x512xf32>
    %158 = tpu.matmul %156, %157, %cst_46 {dimension_numbers = #tpu.dot_dimension_numbers<[1], [0], [0], [1], [0, 0, 1, 1], [], []>} : vector<8x128xbf16>, vector<128x512xbf16>, vector<8x512xf32> -> vector<8x512xf32>
    %159 = arith.addf %155, %158 : vector<8x512xf32>
    %160 = vector.extract_strided_slice %159 {offsets = [0, 0], sizes = [8, 384], strides = [1, 1]} : vector<8x512xf32> to vector<8x384xf32>
    %cst_47 = arith.constant 0.000000e+00 : f32
    %161 = vector.broadcast %cst_47 : f32 to vector<8x384xf32>
    %162 = arith.subf %161, %160 : vector<8x384xf32>
    %163 = math.exp %162 : vector<8x384xf32>
    %cst_48 = arith.constant 1.000000e+00 : f32
    %164 = vector.broadcast %cst_48 : f32 to vector<8x384xf32>
    %165 = arith.addf %164, %163 : vector<8x384xf32>
    %166 = tpu.reciprocal %165 {approx = true} : vector<8x384xf32> -> vector<8x384xf32>
    %167 = vector.extract_strided_slice %159 {offsets = [0, 384], sizes = [8, 128], strides = [1, 1]} : vector<8x512xf32> to vector<8x128xf32>
    %168 = math.tanh %167 : vector<8x128xf32>
    %169 = vector.extract_strided_slice %166 {offsets = [0, 0], sizes = [8, 128], strides = [1, 1]} : vector<8x384xf32> to vector<8x128xf32>
    %170 = vector.extract_strided_slice %166 {offsets = [0, 128], sizes = [8, 128], strides = [1, 1]} : vector<8x384xf32> to vector<8x128xf32>
    %171 = vector.extract_strided_slice %166 {offsets = [0, 256], sizes = [8, 128], strides = [1, 1]} : vector<8x384xf32> to vector<8x128xf32>
    %172 = arith.mulf %170, %149 : vector<8x128xf32>
    %173 = arith.mulf %169, %168 : vector<8x128xf32>
    %174 = arith.addf %172, %173 : vector<8x128xf32>
    %175 = math.tanh %174 : vector<8x128xf32>
    %176 = arith.mulf %171, %175 : vector<8x128xf32>
    %c7_i32 = arith.constant 7 : i32
    %177 = arith.index_cast %c7_i32 : i32 to index
    %c0_49 = arith.constant 0 : index
    %c0_50 = arith.constant 0 : index
    %178 = vector.load %arg1[%177, %c0_49, %c0_50] : memref<8x8x512xbf16, #tpu.memory_space<vmem>>, vector<1x8x512xbf16>
    %179 = vector.shape_cast %178 : vector<1x8x512xbf16> to vector<8x512xbf16>
    %180 = arith.extf %179 : vector<8x512xbf16> to vector<8x512xf32>
    %181 = arith.truncf %176 : vector<8x128xf32> to vector<8x128xbf16>
    %c0_51 = arith.constant 0 : index
    %c0_52 = arith.constant 0 : index
    %182 = vector.load %arg2[%c0_51, %c0_52] : memref<128x512xbf16, #tpu.memory_space<vmem>>, vector<128x512xbf16>
    %cst_53 = arith.constant dense<0.000000e+00> : vector<8x512xf32>
    %183 = tpu.matmul %181, %182, %cst_53 {dimension_numbers = #tpu.dot_dimension_numbers<[1], [0], [0], [1], [0, 0, 1, 1], [], []>} : vector<8x128xbf16>, vector<128x512xbf16>, vector<8x512xf32> -> vector<8x512xf32>
    %184 = arith.addf %180, %183 : vector<8x512xf32>
    %185 = vector.extract_strided_slice %184 {offsets = [0, 0], sizes = [8, 384], strides = [1, 1]} : vector<8x512xf32> to vector<8x384xf32>
    %cst_54 = arith.constant 0.000000e+00 : f32
    %186 = vector.broadcast %cst_54 : f32 to vector<8x384xf32>
    %187 = arith.subf %186, %185 : vector<8x384xf32>
    %188 = math.exp %187 : vector<8x384xf32>
    %cst_55 = arith.constant 1.000000e+00 : f32
    %189 = vector.broadcast %cst_55 : f32 to vector<8x384xf32>
    %190 = arith.addf %189, %188 : vector<8x384xf32>
    %191 = tpu.reciprocal %190 {approx = true} : vector<8x384xf32> -> vector<8x384xf32>
    %192 = vector.extract_strided_slice %184 {offsets = [0, 384], sizes = [8, 128], strides = [1, 1]} : vector<8x512xf32> to vector<8x128xf32>
    %193 = math.tanh %192 : vector<8x128xf32>
    %194 = vector.extract_strided_slice %191 {offsets = [0, 0], sizes = [8, 128], strides = [1, 1]} : vector<8x384xf32> to vector<8x128xf32>
    %195 = vector.extract_strided_slice %191 {offsets = [0, 128], sizes = [8, 128], strides = [1, 1]} : vector<8x384xf32> to vector<8x128xf32>
    %196 = vector.extract_strided_slice %191 {offsets = [0, 256], sizes = [8, 128], strides = [1, 1]} : vector<8x384xf32> to vector<8x128xf32>
    %197 = arith.mulf %195, %174 : vector<8x128xf32>
    %198 = arith.mulf %194, %193 : vector<8x128xf32>
    %199 = arith.addf %197, %198 : vector<8x128xf32>
    %200 = math.tanh %199 : vector<8x128xf32>
    %201 = arith.mulf %196, %200 : vector<8x128xf32>
    %c8_i32 = arith.constant 8 : i32
    %c0_56 = arith.constant 0 : index
    %c0_57 = arith.constant 0 : index
    %202 = vector.load %arg3[%c0_56, %c0_57] : memref<128x128xf32, #tpu.memory_space<vmem>>, vector<128x128xf32>
    %cst_58 = arith.constant dense<0.000000e+00> : vector<8x128xf32>
    %203 = tpu.matmul %201, %202, %cst_58 {dimension_numbers = #tpu.dot_dimension_numbers<[1], [0], [0], [1], [0, 0, 1, 1], [], []>} : vector<8x128xf32>, vector<128x128xf32>, vector<8x128xf32> -> vector<8x128xf32>
    %c0_59 = arith.constant 0 : index
    %c0_60 = arith.constant 0 : index
    %204 = vector.load %arg4[%c0_59, %c0_60] : memref<1x128xf32, #tpu.memory_space<vmem>>, vector<1x128xf32>
    %205 = vector.broadcast %204 : vector<1x128xf32> to vector<8x128xf32>
    %206 = arith.addf %203, %205 : vector<8x128xf32>
    %cst_61 = arith.constant 0.000000e+00 : f32
    %207 = vector.broadcast %cst_61 : f32 to vector<8x128xf32>
    %208 = arith.maximumf %206, %207 : vector<8x128xf32>
    %cst_62 = arith.constant dense<0.000000e+00> : vector<128xf32>
    %209 = vector.multi_reduction <add>, %208, %cst_62 [0] : vector<8x128xf32> to vector<128xf32>
    %210 = vector.shape_cast %209 : vector<128xf32> to vector<1x128xf32>
    %cst_63 = arith.constant 8.000000e+00 : f32
    %211 = vector.broadcast %cst_63 : f32 to vector<1x128xf32>
    %212 = arith.divf %210, %211 : vector<1x128xf32>
    %213 = vector.broadcast %212 : vector<1x128xf32> to vector<8x128xf32>
    %214 = arith.subf %208, %213 : vector<8x128xf32>
    %215 = arith.mulf %214, %214 : vector<8x128xf32>
    %cst_64 = arith.constant dense<0.000000e+00> : vector<128xf32>
    %216 = vector.multi_reduction <add>, %215, %cst_64 [0] : vector<8x128xf32> to vector<128xf32>
    %217 = vector.shape_cast %216 : vector<128xf32> to vector<1x128xf32>
    %cst_65 = arith.constant 8.000000e+00 : f32
    %218 = vector.broadcast %cst_65 : f32 to vector<1x128xf32>
    %219 = arith.divf %217, %218 : vector<1x128xf32>
    %c0_66 = arith.constant 0 : index
    %c0_67 = arith.constant 0 : index
    %220 = vector.load %arg5[%c0_66, %c0_67] : memref<1x128xf32, #tpu.memory_space<vmem>>, vector<1x128xf32>
    %221 = vector.broadcast %212 : vector<1x128xf32> to vector<8x128xf32>
    %222 = arith.subf %208, %221 : vector<8x128xf32>
    %223 = vector.broadcast %220 : vector<1x128xf32> to vector<8x128xf32>
    %224 = arith.mulf %223, %222 : vector<8x128xf32>
    %cst_68 = arith.constant 9.99999974E-6 : f32
    %225 = vector.broadcast %cst_68 : f32 to vector<1x128xf32>
    %226 = arith.addf %219, %225 : vector<1x128xf32>
    %227 = math.rsqrt %226 : vector<1x128xf32>
    %228 = vector.broadcast %227 : vector<1x128xf32> to vector<8x128xf32>
    %229 = arith.mulf %224, %228 : vector<8x128xf32>
    %c0_69 = arith.constant 0 : index
    %c0_70 = arith.constant 0 : index
    %230 = vector.load %arg6[%c0_69, %c0_70] : memref<1x128xf32, #tpu.memory_space<vmem>>, vector<1x128xf32>
    %231 = vector.broadcast %230 : vector<1x128xf32> to vector<8x128xf32>
    %232 = arith.addf %229, %231 : vector<8x128xf32>
    %c0_71 = arith.constant 0 : index
    %c0_72 = arith.constant 0 : index
    %233 = vector.load %arg7[%c0_71, %c0_72] : memref<128x128xf32, #tpu.memory_space<vmem>>, vector<128x128xf32>
    %cst_73 = arith.constant dense<0.000000e+00> : vector<8x128xf32>
    %234 = tpu.matmul %232, %233, %cst_73 {dimension_numbers = #tpu.dot_dimension_numbers<[1], [0], [0], [1], [0, 0, 1, 1], [], []>} : vector<8x128xf32>, vector<128x128xf32>, vector<8x128xf32> -> vector<8x128xf32>
    %c0_74 = arith.constant 0 : index
    %c0_75 = arith.constant 0 : index
    %235 = vector.load %arg8[%c0_74, %c0_75] : memref<1x128xf32, #tpu.memory_space<vmem>>, vector<1x128xf32>
    %236 = vector.broadcast %235 : vector<1x128xf32> to vector<8x128xf32>
    %237 = arith.addf %234, %236 : vector<8x128xf32>
    %238 = arith.negf %237 : vector<8x128xf32>
    %239 = math.exp %238 : vector<8x128xf32>
    %cst_76 = arith.constant 1.000000e+00 : f32
    %240 = vector.broadcast %cst_76 : f32 to vector<8x128xf32>
    %241 = arith.addf %240, %239 : vector<8x128xf32>
    %242 = arith.divf %240, %241 : vector<8x128xf32>
    %c0_77 = arith.constant 0 : index
    %c0_78 = arith.constant 0 : index
    %243 = vector.load %arg9[%c0_77, %c0_78] : memref<8x128xf32, #tpu.memory_space<vmem>>, vector<8x128xf32>
    tpu.vector_store %arg9[%c0_77, %c0_78], %242 {strides = array<i32>} : memref<8x128xf32, #tpu.memory_space<vmem>>, vector<8x128xf32>,
    return
  }
  func.func @transform_0(%arg0: i32) -> (i32, i32, i32) {
    %c0_i32 = arith.constant 0 : i32
    %c0_i32_0 = arith.constant 0 : i32
    %c0_i32_1 = arith.constant 0 : i32
    %c0_i32_2 = arith.constant 0 : i32
    return %c0_i32, %c0_i32_0, %c0_i32_1 : i32, i32, i32
  }
  func.func @transform_1(%arg0: i32) -> (i32, i32) {
    %c0_i32 = arith.constant 0 : i32
    %c0_i32_0 = arith.constant 0 : i32
    %c0_i32_1 = arith.constant 0 : i32
    return %c0_i32, %c0_i32_0 : i32, i32
  }
  func.func @transform_2(%arg0: i32) -> (i32, i32) {
    %c0_i32 = arith.constant 0 : i32
    %c0_i32_0 = arith.constant 0 : i32
    %c0_i32_1 = arith.constant 0 : i32
    return %c0_i32, %c0_i32_0 : i32, i32
  }
  func.func @transform_3(%arg0: i32) -> (i32, i32) {
    %c0_i32 = arith.constant 0 : i32
    %c0_i32_0 = arith.constant 0 : i32
    %c0_i32_1 = arith.constant 0 : i32
    return %c0_i32, %c0_i32_0 : i32, i32
  }
  func.func @transform_4(%arg0: i32) -> (i32, i32) {
    %c0_i32 = arith.constant 0 : i32
    %c0_i32_0 = arith.constant 0 : i32
    %c0_i32_1 = arith.constant 0 : i32
    return %c0_i32, %c0_i32_0 : i32, i32
  }
  func.func @transform_5(%arg0: i32) -> (i32, i32) {
    %c0_i32 = arith.constant 0 : i32
    %c0_i32_0 = arith.constant 0 : i32
    %c0_i32_1 = arith.constant 0 : i32
    return %c0_i32, %c0_i32_0 : i32, i32
  }
  func.func @transform_6(%arg0: i32) -> (i32, i32) {
    %c0_i32 = arith.constant 0 : i32
    %c0_i32_0 = arith.constant 0 : i32
    %c0_i32_1 = arith.constant 0 : i32
    return %c0_i32, %c0_i32_0 : i32, i32
  }
  func.func @transform_7(%arg0: i32) -> (i32, i32) {
    %c0_i32 = arith.constant 0 : i32
    %c0_i32_0 = arith.constant 0 : i32
    %c0_i32_1 = arith.constant 0 : i32
    return %c0_i32, %c0_i32_0 : i32, i32
  }
  func.func @transform_8(%arg0: i32) -> (i32, i32) {
    %c0_i32 = arith.constant 0 : i32
    %c0_i32_0 = arith.constant 0 : i32
    %c0_i32_1 = arith.constant 0 : i32
    return %c0_i32, %c0_i32_0 : i32, i32
  }
}

</mosaic_0001>

<llo_original>
// kernel: lstm_module_forward.1
$region0: #{lstm_module_forward.1}
  #allocation0 [shape = 'u32[]', space=smem, size = 0x4, offset = 0x4, fixed_abs, tag = 'smem constant byte address 0x4 - core index']
  #allocation1 [shape = 'u32[144,128]{1,0:T(1,128)}', space=vmem, size = 0x12000, scoped, tag = 'internal scratch']
  %s0 = inlined_call_operand.vmem [shape: bf16[8,8,512], index: 0, kind: input, shape index: {}]
  %s1 = inlined_call_operand.vmem [shape: bf16[128,512], index: 1, kind: input, shape index: {}]
  %s2 = inlined_call_operand.vmem [shape: f32[128,128], index: 2, kind: input, shape index: {}]
  %s3 = inlined_call_operand.vmem [shape: f32[1,128], index: 3, kind: input, shape index: {}]
  %s4 = inlined_call_operand.vmem [shape: f32[1,128], index: 4, kind: input, shape index: {}]
  %s5 = inlined_call_operand.vmem [shape: f32[1,128], index: 5, kind: input, shape index: {}]
  %s6 = inlined_call_operand.vmem [shape: f32[128,128], index: 6, kind: input, shape index: {}]
  %s7 = inlined_call_operand.vmem [shape: f32[1,128], index: 7, kind: input, shape index: {}]
  %s8 = inlined_call_operand.vmem [shape: f32[8,128], index: 8, kind: output, shape index: {}]
  %s9 = sld [smem:[#allocation0]]
  $region42: #{lstm_module_forward.1} parent=0
    _
  %s11 = ssub.s32 1, %s9
  %s12 = scalar_select 0, %s11, %s9
  // Predicated region
  $region2: #{lstm_module_forward.1} parent=0 // pred_check
    _
  $region3: #{lstm_module_forward.1} parent=0 // pred_check_branch
    %14 = sbr.rel (0) target = $region5
  $region4: #{lstm_module_forward.1} parent=0 // pred_region
    _
  $region5: #{lstm_module_forward.1} parent=0 // pred_fallthru
    _
  // Predicated region
  $region6: #{lstm_module_forward.1} parent=0 // pred_check
    _
  $region7: #{lstm_module_forward.1} parent=0 // pred_check_branch
    %16 = sbr.rel (0) target = $region9
  $region8: #{lstm_module_forward.1} parent=0 // pred_region
    _
  $region9: #{lstm_module_forward.1} parent=0 // pred_fallthru
    _
  // Predicated region
  $region10: #{lstm_module_forward.1} parent=0 // pred_check
    _
  $region11: #{lstm_module_forward.1} parent=0 // pred_check_branch
    %18 = sbr.rel (0) target = $region13
  $region12: #{lstm_module_forward.1} parent=0 // pred_region
    _
  $region13: #{lstm_module_forward.1} parent=0 // pred_fallthru
    _
  // Predicated region
  $region14: #{lstm_module_forward.1} parent=0 // pred_check
    _
  $region15: #{lstm_module_forward.1} parent=0 // pred_check_branch
    %20 = sbr.rel (0) target = $region17
  $region16: #{lstm_module_forward.1} parent=0 // pred_region
    _
  $region17: #{lstm_module_forward.1} parent=0 // pred_fallthru
    _
  // Predicated region
  $region18: #{lstm_module_forward.1} parent=0 // pred_check
    _
  $region19: #{lstm_module_forward.1} parent=0 // pred_check_branch
    %22 = sbr.rel (0) target = $region21
  $region20: #{lstm_module_forward.1} parent=0 // pred_region
    _
  $region21: #{lstm_module_forward.1} parent=0 // pred_fallthru
    _
  // Predicated region
  $region22: #{lstm_module_forward.1} parent=0 // pred_check
    _
  $region23: #{lstm_module_forward.1} parent=0 // pred_check_branch
    %24 = sbr.rel (0) target = $region25
  $region24: #{lstm_module_forward.1} parent=0 // pred_region
    _
  $region25: #{lstm_module_forward.1} parent=0 // pred_fallthru
    _
  // Predicated region
  $region26: #{lstm_module_forward.1} parent=0 // pred_check
    _
  $region27: #{lstm_module_forward.1} parent=0 // pred_check_branch
    %26 = sbr.rel (0) target = $region29
  $region28: #{lstm_module_forward.1} parent=0 // pred_region
    _
  $region29: #{lstm_module_forward.1} parent=0 // pred_fallthru
    _
  // Predicated region
  $region30: #{lstm_module_forward.1} parent=0 // pred_check
    _
  $region31: #{lstm_module_forward.1} parent=0 // pred_check_branch
    %28 = sbr.rel (0) target = $region33
  $region32: #{lstm_module_forward.1} parent=0 // pred_region
    _
  $region33: #{lstm_module_forward.1} parent=0 // pred_fallthru
    _
  %v30 = vld [vmem:[%s0] sm:$0xff]
  %v31 = vld [vmem:[%s0 + $0x8] sm:$0xff]
  %v32 = vunpack.c.l.bf16 %v30
  %v33 = vunpack.c.h.bf16 %v30
  %v34 = vunpack.c.l.bf16 %v31
  %v35 = vunpack.c.h.bf16 %v31
  %v36 = vld [vmem:[%s1] sm:$0xff]
  %v37 = vld [vmem:[%s1 + $0x8] sm:$0xff]
  %v38 = vld [vmem:[%s1 + $0x10] sm:$0xff]
  %v39 = vld [vmem:[%s1 + $0x18] sm:$0xff]
  %v40 = vld [vmem:[%s1 + $0x20] sm:$0xff]
  %v41 = vld [vmem:[%s1 + $0x28] sm:$0xff]
  %v42 = vld [vmem:[%s1 + $0x30] sm:$0xff]
  %v43 = vld [vmem:[%s1 + $0x38] sm:$0xff]
  %v44 = vld [vmem:[%s1 + $0x40] sm:$0xff]
  %v45 = vld [vmem:[%s1 + $0x48] sm:$0xff]
  %v46 = vld [vmem:[%s1 + $0x50] sm:$0xff]
  %v47 = vld [vmem:[%s1 + $0x58] sm:$0xff]
  %v48 = vld [vmem:[%s1 + $0x60] sm:$0xff]
  %v49 = vld [vmem:[%s1 + $0x68] sm:$0xff]
  %v50 = vld [vmem:[%s1 + $0x70] sm:$0xff]
  %v51 = vld [vmem:[%s1 + $0x78] sm:$0xff]
  %v52 = vld [vmem:[%s1 + $0x80] sm:$0xff]
  %v53 = vld [vmem:[%s1 + $0x88] sm:$0xff]
  %v54 = vld [vmem:[%s1 + $0x90] sm:$0xff]
  %v55 = vld [vmem:[%s1 + $0x98] sm:$0xff]
  %v56 = vld [vmem:[%s1 + $0xa0] sm:$0xff]
  %v57 = vld [vmem:[%s1 + $0xa8] sm:$0xff]
  %v58 = vld [vmem:[%s1 + $0xb0] sm:$0xff]
  %v59 = vld [vmem:[%s1 + $0xb8] sm:$0xff]
  %v60 = vld [vmem:[%s1 + $0xc0] sm:$0xff]
  %v61 = vld [vmem:[%s1 + $0xc8] sm:$0xff]
  %v62 = vld [vmem:[%s1 + $0xd0] sm:$0xff]
  %v63 = vld [vmem:[%s1 + $0xd8] sm:$0xff]
  %v64 = vld [vmem:[%s1 + $0xe0] sm:$0xff]
  %v65 = vld [vmem:[%s1 + $0xe8] sm:$0xff]
  %v66 = vld [vmem:[%s1 + $0xf0] sm:$0xff]
  %v67 = vld [vmem:[%s1 + $0xf8] sm:$0xff]
  %v100 = vunpack.c.l.b16 %v36
  %v101 = vunpack.c.h.b16 %v36
  %v102 = vunpack.c.l.b16 %v37
  %v103 = vunpack.c.h.b16 %v37
  %v104 = vunpack.c.l.b16 %v38
  %v105 = vunpack.c.h.b16 %v38
  %v106 = vunpack.c.l.b16 %v39
  %v107 = vunpack.c.h.b16 %v39
  %v108 = vunpack.c.l.b16 %v40
  %v109 = vunpack.c.h.b16 %v40
  %v110 = vunpack.c.l.b16 %v41
  %v111 = vunpack.c.h.b16 %v41
  %v112 = vunpack.c.l.b16 %v42
  %v113 = vunpack.c.h.b16 %v42
  %v114 = vunpack.c.l.b16 %v43
  %v115 = vunpack.c.h.b16 %v43
  %v116 = vunpack.c.l.b16 %v44
  %v117 = vunpack.c.h.b16 %v44
  %v118 = vunpack.c.l.b16 %v45
  %v119 = vunpack.c.h.b16 %v45
  %v120 = vunpack.c.l.b16 %v46
  %v121 = vunpack.c.h.b16 %v46
  %v122 = vunpack.c.l.b16 %v47
  %v123 = vunpack.c.h.b16 %v47
  %v124 = vunpack.c.l.b16 %v48
  %v125 = vunpack.c.h.b16 %v48
  %v126 = vunpack.c.l.b16 %v49
  %v127 = vunpack.c.h.b16 %v49
  %v128 = vunpack.c.l.b16 %v50
  %v129 = vunpack.c.h.b16 %v50
  %v130 = vunpack.c.l.b16 %v51
  %v131 = vunpack.c.h.b16 %v51
  %v132 = vunpack.c.l.b16 %v52
  %v133 = vunpack.c.h.b16 %v52
  %v134 = vunpack.c.l.b16 %v53
  %v135 = vunpack.c.h.b16 %v53
  %v136 = vunpack.c.l.b16 %v54
  %v137 = vunpack.c.h.b16 %v54
  %v138 = vunpack.c.l.b16 %v55
  %v139 = vunpack.c.h.b16 %v55
  %v140 = vunpack.c.l.b16 %v56
  %v141 = vunpack.c.h.b16 %v56
  %v142 = vunpack.c.l.b16 %v57
  %v143 = vunpack.c.h.b16 %v57
  %v144 = vunpack.c.l.b16 %v58
  %v145 = vunpack.c.h.b16 %v58
  %v146 = vunpack.c.l.b16 %v59
  %v147 = vunpack.c.h.b16 %v59
  %v148 = vunpack.c.l.b16 %v60
  %v149 = vunpack.c.h.b16 %v60
  %v150 = vunpack.c.l.b16 %v61
  %v151 = vunpack.c.h.b16 %v61
  %v152 = vunpack.c.l.b16 %v62
  %v153 = vunpack.c.h.b16 %v62
  %v154 = vunpack.c.l.b16 %v63
  %v155 = vunpack.c.h.b16 %v63
  %v156 = vunpack.c.l.b16 %v64
  %v157 = vunpack.c.h.b16 %v64
  %v158 = vunpack.c.l.b16 %v65
  %v159 = vunpack.c.h.b16 %v65
  %v160 = vunpack.c.l.b16 %v66
  %v161 = vunpack.c.h.b16 %v66
  %v162 = vunpack.c.l.b16 %v67
  %v163 = vunpack.c.h.b16 %v67
  %v164 = vpack.c.b16 %v104, %v100
  %v165 = vpack.c.b16 %v105, %v101
  %v166 = vpack.c.b16 %v106, %v102
  %v167 = vpack.c.b16 %v107, %v103
  %v168 = vpack.c.b16 %v112, %v108
  %v169 = vpack.c.b16 %v113, %v109
  %v170 = vpack.c.b16 %v114, %v110
  %v171 = vpack.c.b16 %v115, %v111
  %v172 = vpack.c.b16 %v120, %v116
  %v173 = vpack.c.b16 %v121, %v117
  %v174 = vpack.c.b16 %v122, %v118
  %v175 = vpack.c.b16 %v123, %v119
  %v176 = vpack.c.b16 %v128, %v124
  %v177 = vpack.c.b16 %v129, %v125
  %v178 = vpack.c.b16 %v130, %v126
  %v179 = vpack.c.b16 %v131, %v127
  %v180 = vpack.c.b16 %v136, %v132
  %v181 = vpack.c.b16 %v137, %v133
  %v182 = vpack.c.b16 %v138, %v134
  %v183 = vpack.c.b16 %v139, %v135
  %v184 = vpack.c.b16 %v144, %v140
  %v185 = vpack.c.b16 %v145, %v141
  %v186 = vpack.c.b16 %v146, %v142
  %v187 = vpack.c.b16 %v147, %v143
  %v188 = vpack.c.b16 %v152, %v148
  %v189 = vpack.c.b16 %v153, %v149
  %v190 = vpack.c.b16 %v154, %v150
  %v191 = vpack.c.b16 %v155, %v151
  %v192 = vpack.c.b16 %v160, %v156
  %v193 = vpack.c.b16 %v161, %v157
  %v194 = vpack.c.b16 %v162, %v158
  %v195 = vpack.c.b16 %v163, %v159
  %228 = vmatprep.subr.bf16.mxu0 %v165
  %229 = vmatpush1.bf16.msra.mxu0 %v164
  %230 = vmatprep.subr.bf16.mxu0 %v169
  %231 = vmatpush1.bf16.msra.mxu0 %v168
  %232 = vmatprep.subr.bf16.mxu0 %v173
  %233 = vmatpush1.bf16.msra.mxu0 %v172
  %234 = vmatprep.subr.bf16.mxu0 %v177
  %235 = vmatpush1.bf16.msra.mxu0 %v176
  %236 = vmatprep.subr.bf16.mxu0 %v181
  %237 = vmatpush1.bf16.msra.mxu0 %v180
  %238 = vmatprep.subr.bf16.mxu0 %v185
  %239 = vmatpush1.bf16.msra.mxu0 %v184
  %240 = vmatprep.subr.bf16.mxu0 %v189
  %241 = vmatpush1.bf16.msra.mxu0 %v188
  %242 = vmatprep.subr.bf16.mxu0 %v193
  %243 = vmatpush1.bf16.msra.mxu0 %v192
  %244 = vmatprep.subr.bf16.mxu0 0
  %245 = vmatpush1.bf16.msra.mxu0 0
  %246 = vmatprep.subr.bf16.mxu0 0
  %247 = vmatpush1.bf16.msra.mxu0 0
  %248 = vmatprep.subr.bf16.mxu0 0
  %249 = vmatpush1.bf16.msra.mxu0 0
  %250 = vmatprep.subr.bf16.mxu0 0
  %251 = vmatpush1.bf16.msra.mxu0 0
  %252 = vmatprep.subr.bf16.mxu0 0
  %253 = vmatpush1.bf16.msra.mxu0 0
  %254 = vmatprep.subr.bf16.mxu0 0
  %255 = vmatpush1.bf16.msra.mxu0 0
  %256 = vmatprep.subr.bf16.mxu0 0
  %257 = vmatpush1.bf16.msra.mxu0 0
  %258 = vmatprep.subr.bf16.mxu0 0
  %259 = vmatpush1.bf16.msra.mxu0 0
  %260 = vmatprep.mubr.bf16.mxu0 0
  %261 = vmatmul.mubr.bf16.gmra.mrb[0].mxu0 0
  %v262 = vpop.f32.mrb[0].mxu0
  %v263 = vadd.f32 0.0, %v262
  %v264 = vpop.f32.mrb[0].mxu0
  %v265 = vadd.f32 0.0, %v264
  %v266 = vpop.f32.mrb[0].mxu0
  %v267 = vpop.f32.mrb[0].mxu0
  %268 = vdwg.mxu0
  %269 = vmatprep.subr.bf16.mxu0 %v167
  %270 = vmatpush1.bf16.msra.mxu0 %v166
  %271 = vmatprep.subr.bf16.mxu0 %v171
  %272 = vmatpush1.bf16.msra.mxu0 %v170
  %273 = vmatprep.subr.bf16.mxu0 %v175
  %274 = vmatpush1.bf16.msra.mxu0 %v174
  %275 = vmatprep.subr.bf16.mxu0 %v179
  %276 = vmatpush1.bf16.msra.mxu0 %v178
  %277 = vmatprep.subr.bf16.mxu0 %v183
  %278 = vmatpush1.bf16.msra.mxu0 %v182
  %279 = vmatprep.subr.bf16.mxu0 %v187
  %280 = vmatpush1.bf16.msra.mxu0 %v186
  %281 = vmatprep.subr.bf16.mxu0 %v191
  %282 = vmatpush1.bf16.msra.mxu0 %v190
  %283 = vmatprep.subr.bf16.mxu0 %v195
  %284 = vmatpush1.bf16.msra.mxu0 %v194
  %285 = vmatprep.subr.bf16.mxu0 0
  %286 = vmatpush1.bf16.msra.mxu0 0
  %287 = vmatprep.subr.bf16.mxu0 0
  %288 = vmatpush1.bf16.msra.mxu0 0
  %289 = vmatprep.subr.bf16.mxu0 0
  %290 = vmatpush1.bf16.msra.mxu0 0
  %291 = vmatprep.subr.bf16.mxu0 0
  %292 = vmatpush1.bf16.msra.mxu0 0
  %293 = vmatprep.subr.bf16.mxu0 0
  %294 = vmatpush1.bf16.msra.mxu0 0
  %295 = vmatprep.subr.bf16.mxu0 0
  %296 = vmatpush1.bf16.msra.mxu0 0
  %297 = vmatprep.subr.bf16.mxu0 0
  %298 = vmatpush1.bf16.msra.mxu0 0
  %299 = vmatprep.subr.bf16.mxu0 0
  %300 = vmatpush1.bf16.msra.mxu0 0
  %301 = vmatprep.mubr.bf16.mxu0 0
  %302 = vmatmul.mubr.bf16.gmra.mrb[0].mxu0 0
  %v303 = vpop.f32.mrb[0].mxu0
  %v304 = vadd.f32 0.0, %v303
  %v305 = vpop.f32.mrb[0].mxu0
  %v306 = vadd.f32 0.0, %v305
  %v307 = vpop.f32.mrb[0].mxu0
  %v308 = vpop.f32.mrb[0].mxu0
  %309 = vdwg.mxu0
  %v310 = vadd.f32 %v32, %v263
  %v311 = vadd.f32 %v33, %v265
  %v312 = vadd.f32 %v34, %v304
  %v313 = vadd.f32 %v35, %v306
  %v314 = vsub.f32 0.0, %v310
  %v315 = vsub.f32 0.0, %v311
  %v316 = vsub.f32 0.0, %v312
  %v317 = vmul.f32 %v314, 1.442695
  %v318 = vpow.pop %v317
  %v319 = vmul.f32 %v315, 1.442695
  %v320 = vpow.pop %v319
  %v321 = vmul.f32 %v316, 1.442695
  %v322 = vpow.pop %v321
  %v323 = vadd.f32 %v318, 1.0
  %v324 = vadd.f32 %v320, 1.0
  %v325 = vadd.f32 %v322, 1.0
  %v326 = vrcp.pop %v323
  %v327 = vrcp.pop %v324
  %v328 = vrcp.pop %v325
  %v329 = vtanh.pop %v313
  %v330 = vmul.f32 %v327, 0.0
  %v331 = vmul.f32 %v326, %v329
  %v332 = vadd.f32 %v330, %v331
  %v333 = vtanh.pop %v332
  %v334 = vmul.f32 %v328, %v333
  %s335 = scalar_lea.vmem %s0, 16
  %v336 = vld [vmem:[%s335] sm:$0xff]
  %v337 = vld [vmem:[%s335 + $0x8] sm:$0xff]
  %v338 = vunpack.c.l.bf16 %v336
  %v339 = vunpack.c.h.bf16 %v336
  %v340 = vunpack.c.l.bf16 %v337
  %v341 = vunpack.c.h.bf16 %v337
  %v342 = vpack.c.bf16 %v334, %v334
  %343 = vmatprep.subr.bf16.mxu0 %v165
  %344 = vmatpush1.bf16.msra.mxu0 %v164
  %345 = vmatprep.subr.bf16.mxu0 %v169
  %346 = vmatpush1.bf16.msra.mxu0 %v168
  %347 = vmatprep.subr.bf16.mxu0 %v173
  %348 = vmatpush1.bf16.msra.mxu0 %v172
  %349 = vmatprep.subr.bf16.mxu0 %v177
  %350 = vmatpush1.bf16.msra.mxu0 %v176
  %351 = vmatprep.subr.bf16.mxu0 %v181
  %352 = vmatpush1.bf16.msra.mxu0 %v180
  %353 = vmatprep.subr.bf16.mxu0 %v185
  %354 = vmatpush1.bf16.msra.mxu0 %v184
  %355 = vmatprep.subr.bf16.mxu0 %v189
  %356 = vmatpush1.bf16.msra.mxu0 %v188
  %357 = vmatprep.subr.bf16.mxu0 %v193
  %358 = vmatpush1.bf16.msra.mxu0 %v192
  %359 = vmatprep.subr.bf16.mxu0 0
  %360 = vmatpush1.bf16.msra.mxu0 0
  %361 = vmatprep.subr.bf16.mxu0 0
  %362 = vmatpush1.bf16.msra.mxu0 0
  %363 = vmatprep.subr.bf16.mxu0 0
  %364 = vmatpush1.bf16.msra.mxu0 0
  %365 = vmatprep.subr.bf16.mxu0 0
  %366 = vmatpush1.bf16.msra.mxu0 0
  %367 = vmatprep.subr.bf16.mxu0 0
  %368 = vmatpush1.bf16.msra.mxu0 0
  %369 = vmatprep.subr.bf16.mxu0 0
  %370 = vmatpush1.bf16.msra.mxu0 0
  %371 = vmatprep.subr.bf16.mxu0 0
  %372 = vmatpush1.bf16.msra.mxu0 0
  %373 = vmatprep.subr.bf16.mxu0 0
  %374 = vmatpush1.bf16.msra.mxu0 0
  %375 = vmatprep.mubr.bf16.mxu0 0
  %376 = vmatmul.mubr.bf16.gmra.mrb[0].mxu0 %v342
  %v377 = vpop.f32.mrb[0].mxu0
  %v378 = vadd.f32 0.0, %v377
  %v379 = vpop.f32.mrb[0].mxu0
  %v380 = vadd.f32 0.0, %v379
  %v381 = vpop.f32.mrb[0].mxu0
  %v382 = vpop.f32.mrb[0].mxu0
  %383 = vdwg.mxu0
  %384 = vmatprep.subr.bf16.mxu0 %v167
  %385 = vmatpush1.bf16.msra.mxu0 %v166
  %386 = vmatprep.subr.bf16.mxu0 %v171
  %387 = vmatpush1.bf16.msra.mxu0 %v170
  %388 = vmatprep.subr.bf16.mxu0 %v175
  %389 = vmatpush1.bf16.msra.mxu0 %v174
  %390 = vmatprep.subr.bf16.mxu0 %v179
  %391 = vmatpush1.bf16.msra.mxu0 %v178
  %392 = vmatprep.subr.bf16.mxu0 %v183
  %393 = vmatpush1.bf16.msra.mxu0 %v182
  %394 = vmatprep.subr.bf16.mxu0 %v187
  %395 = vmatpush1.bf16.msra.mxu0 %v186
  %396 = vmatprep.subr.bf16.mxu0 %v191
  %397 = vmatpush1.bf16.msra.mxu0 %v190
  %398 = vmatprep.subr.bf16.mxu0 %v195
  %399 = vmatpush1.bf16.msra.mxu0 %v194
  %400 = vmatprep.subr.bf16.mxu0 0
  %401 = vmatpush1.bf16.msra.mxu0 0
  %402 = vmatprep.subr.bf16.mxu0 0
  %403 = vmatpush1.bf16.msra.mxu0 0
  %404 = vmatprep.subr.bf16.mxu0 0
  %405 = vmatpush1.bf16.msra.mxu0 0
  %406 = vmatprep.subr.bf16.mxu0 0
  %407 = vmatpush1.bf16.msra.mxu0 0
  %408 = vmatprep.subr.bf16.mxu0 0
  %409 = vmatpush1.bf16.msra.mxu0 0
  %410 = vmatprep.subr.bf16.mxu0 0
  %411 = vmatpush1.bf16.msra.mxu0 0
  %412 = vmatprep.subr.bf16.mxu0 0
  %413 = vmatpush1.bf16.msra.mxu0 0
  %414 = vmatprep.subr.bf16.mxu0 0
  %415 = vmatpush1.bf16.msra.mxu0 0
  %416 = vmatprep.mubr.bf16.mxu0 0
  %417 = vmatmul.mubr.bf16.gmra.mrb[0].mxu0 %v342
  %v418 = vpop.f32.mrb[0].mxu0
  %v419 = vadd.f32 0.0, %v418
  %v420 = vpop.f32.mrb[0].mxu0
  %v421 = vadd.f32 0.0, %v420
  %v422 = vpop.f32.mrb[0].mxu0
  %v423 = vpop.f32.mrb[0].mxu0
  %424 = vdwg.mxu0
  %v425 = vadd.f32 %v338, %v378
  %v426 = vadd.f32 %v339, %v380
  %v427 = vadd.f32 %v340, %v419
  %v428 = vadd.f32 %v341, %v421
  %v429 = vsub.f32 0.0, %v425
  %v430 = vsub.f32 0.0, %v426
  %v431 = vsub.f32 0.0, %v427
  %v432 = vmul.f32 %v429, 1.442695
  %v433 = vpow.pop %v432
  %v434 = vmul.f32 %v430, 1.442695
  %v435 = vpow.pop %v434
  %v436 = vmul.f32 %v431, 1.442695
  %v437 = vpow.pop %v436
  %v438 = vadd.f32 %v433, 1.0
  %v439 = vadd.f32 %v435, 1.0
  %v440 = vadd.f32 %v437, 1.0
  %v441 = vrcp.pop %v438
  %v442 = vrcp.pop %v439
  %v443 = vrcp.pop %v440
  %v444 = vtanh.pop %v428
  %v445 = vmul.f32 %v442, %v332
  %v446 = vmul.f32 %v441, %v444
  %v447 = vadd.f32 %v445, %v446
  %v448 = vtanh.pop %v447
  %v449 = vmul.f32 %v443, %v448
  %s450 = scalar_lea.vmem %s0, 32
  %v451 = vld [vmem:[%s450] sm:$0xff]
  %v452 = vld [vmem:[%s450 + $0x8] sm:$0xff]
  %v453 = vunpack.c.l.bf16 %v451
  %v454 = vunpack.c.h.bf16 %v451
  %v455 = vunpack.c.l.bf16 %v452
  %v456 = vunpack.c.h.bf16 %v452
  %v457 = vpack.c.bf16 %v449, %v449
  %458 = vmatprep.subr.bf16.mxu0 %v165
  %459 = vmatpush1.bf16.msra.mxu0 %v164
  %460 = vmatprep.subr.bf16.mxu0 %v169
  %461 = vmatpush1.bf16.msra.mxu0 %v168
  %462 = vmatprep.subr.bf16.mxu0 %v173
  %463 = vmatpush1.bf16.msra.mxu0 %v172
  %464 = vmatprep.subr.bf16.mxu0 %v177
  %465 = vmatpush1.bf16.msra.mxu0 %v176
  %466 = vmatprep.subr.bf16.mxu0 %v181
  %467 = vmatpush1.bf16.msra.mxu0 %v180
  %468 = vmatprep.subr.bf16.mxu0 %v185
  %469 = vmatpush1.bf16.msra.mxu0 %v184
  %470 = vmatprep.subr.bf16.mxu0 %v189
  %471 = vmatpush1.bf16.msra.mxu0 %v188
  %472 = vmatprep.subr.bf16.mxu0 %v193
  %473 = vmatpush1.bf16.msra.mxu0 %v192
  %474 = vmatprep.subr.bf16.mxu0 0
  %475 = vmatpush1.bf16.msra.mxu0 0
  %476 = vmatprep.subr.bf16.mxu0 0
  %477 = vmatpush1.bf16.msra.mxu0 0
  %478 = vmatprep.subr.bf16.mxu0 0
  %479 = vmatpush1.bf16.msra.mxu0 0
  %480 = vmatprep.subr.bf16.mxu0 0
  %481 = vmatpush1.bf16.msra.mxu0 0
  %482 = vmatprep.subr.bf16.mxu0 0
  %483 = vmatpush1.bf16.msra.mxu0 0
  %484 = vmatprep.subr.bf16.mxu0 0
  %485 = vmatpush1.bf16.msra.mxu0 0
  %486 = vmatprep.subr.bf16.mxu0 0
  %487 = vmatpush1.bf16.msra.mxu0 0
  %488 = vmatprep.subr.bf16.mxu0 0
  %489 = vmatpush1.bf16.msra.mxu0 0
  %490 = vmatprep.mubr.bf16.mxu0 0
  %491 = vmatmul.mubr.bf16.gmra.mrb[0].mxu0 %v457
  %v492 = vpop.f32.mrb[0].mxu0
  %v493 = vadd.f32 0.0, %v492
  %v494 = vpop.f32.mrb[0].mxu0
  %v495 = vadd.f32 0.0, %v494
  %v496 = vpop.f32.mrb[0].mxu0
  %v497 = vpop.f32.mrb[0].mxu0
  %498 = vdwg.mxu0
  %499 = vmatprep.subr.bf16.mxu0 %v167
  %500 = vmatpush1.bf16.msra.mxu0 %v166
  %501 = vmatprep.subr.bf16.mxu0 %v171
  %502 = vmatpush1.bf16.msra.mxu0 %v170
  %503 = vmatprep.subr.bf16.mxu0 %v175
  %504 = vmatpush1.bf16.msra.mxu0 %v174
  %505 = vmatprep.subr.bf16.mxu0 %v179
  %506 = vmatpush1.bf16.msra.mxu0 %v178
  %507 = vmatprep.subr.bf16.mxu0 %v183
  %508 = vmatpush1.bf16.msra.mxu0 %v182
  %509 = vmatprep.subr.bf16.mxu0 %v187
  %510 = vmatpush1.bf16.msra.mxu0 %v186
  %511 = vmatprep.subr.bf16.mxu0 %v191
  %512 = vmatpush1.bf16.msra.mxu0 %v190
  %513 = vmatprep.subr.bf16.mxu0 %v195
  %514 = vmatpush1.bf16.msra.mxu0 %v194
  %515 = vmatprep.subr.bf16.mxu0 0
  %516 = vmatpush1.bf16.msra.mxu0 0
  %517 = vmatprep.subr.bf16.mxu0 0
  %518 = vmatpush1.bf16.msra.mxu0 0
  %519 = vmatprep.subr.bf16.mxu0 0
  %520 = vmatpush1.bf16.msra.mxu0 0
  %521 = vmatprep.subr.bf16.mxu0 0
  %522 = vmatpush1.bf16.msra.mxu0 0
  %523 = vmatprep.subr.bf16.mxu0 0
  %524 = vmatpush1.bf16.msra.mxu0 0
  %525 = vmatprep.subr.bf16.mxu0 0
  %526 = vmatpush1.bf16.msra.mxu0 0
  %527 = vmatprep.subr.bf16.mxu0 0
  %528 = vmatpush1.bf16.msra.mxu0 0
  %529 = vmatprep.subr.bf16.mxu0 0
  %530 = vmatpush1.bf16.msra.mxu0 0
  %531 = vmatprep.mubr.bf16.mxu0 0
  %532 = vmatmul.mubr.bf16.gmra.mrb[0].mxu0 %v457
  %v533 = vpop.f32.mrb[0].mxu0
  %v534 = vadd.f32 0.0, %v533
  %v535 = vpop.f32.mrb[0].mxu0
  %v536 = vadd.f32 0.0, %v535
  %v537 = vpop.f32.mrb[0].mxu0
  %v538 = vpop.f32.mrb[0].mxu0
  %539 = vdwg.mxu0
  %v540 = vadd.f32 %v453, %v493
  %v541 = vadd.f32 %v454, %v495
  %v542 = vadd.f32 %v455, %v534
  %v543 = vadd.f32 %v456, %v536
  %v544 = vsub.f32 0.0, %v540
  %v545 = vsub.f32 0.0, %v541
  %v546 = vsub.f32 0.0, %v542
  %v547 = vmul.f32 %v544, 1.442695
  %v548 = vpow.pop %v547
  %v549 = vmul.f32 %v545, 1.442695
  %v550 = vpow.pop %v549
  %v551 = vmul.f32 %v546, 1.442695
  %v552 = vpow.pop %v551
  %v553 = vadd.f32 %v548, 1.0
  %v554 = vadd.f32 %v550, 1.0
  %v555 = vadd.f32 %v552, 1.0
  %v556 = vrcp.pop %v553
  %v557 = vrcp.pop %v554
  %v558 = vrcp.pop %v555
  %v559 = vtanh.pop %v543
  %v560 = vmul.f32 %v557, %v447
  %v561 = vmul.f32 %v556, %v559
  %v562 = vadd.f32 %v560, %v561
  %v563 = vtanh.pop %v562
  %v564 = vmul.f32 %v558, %v563
  %s565 = scalar_lea.vmem %s0, 48
  %v566 = vld [vmem:[%s565] sm:$0xff]
  %v567 = vld [vmem:[%s565 + $0x8] sm:$0xff]
  %v568 = vunpack.c.l.bf16 %v566
  %v569 = vunpack.c.h.bf16 %v566
  %v570 = vunpack.c.l.bf16 %v567
  %v571 = vunpack.c.h.bf16 %v567
  %v572 = vpack.c.bf16 %v564, %v564
  %573 = vmatprep.subr.bf16.mxu0 %v165
  %574 = vmatpush1.bf16.msra.mxu0 %v164
  %575 = vmatprep.subr.bf16.mxu0 %v169
  %576 = vmatpush1.bf16.msra.mxu0 %v168
  %577 = vmatprep.subr.bf16.mxu0 %v173
  %578 = vmatpush1.bf16.msra.mxu0 %v172
  %579 = vmatprep.subr.bf16.mxu0 %v177
  %580 = vmatpush1.bf16.msra.mxu0 %v176
  %581 = vmatprep.subr.bf16.mxu0 %v181
  %582 = vmatpush1.bf16.msra.mxu0 %v180
  %583 = vmatprep.subr.bf16.mxu0 %v185
  %584 = vmatpush1.bf16.msra.mxu0 %v184
  %585 = vmatprep.subr.bf16.mxu0 %v189
  %586 = vmatpush1.bf16.msra.mxu0 %v188
  %587 = vmatprep.subr.bf16.mxu0 %v193
  %588 = vmatpush1.bf16.msra.mxu0 %v192
  %589 = vmatprep.subr.bf16.mxu0 0
  %590 = vmatpush1.bf16.msra.mxu0 0
  %591 = vmatprep.subr.bf16.mxu0 0
  %592 = vmatpush1.bf16.msra.mxu0 0
  %593 = vmatprep.subr.bf16.mxu0 0
  %594 = vmatpush1.bf16.msra.mxu0 0
  %595 = vmatprep.subr.bf16.mxu0 0
  %596 = vmatpush1.bf16.msra.mxu0 0
  %597 = vmatprep.subr.bf16.mxu0 0
  %598 = vmatpush1.bf16.msra.mxu0 0
  %599 = vmatprep.subr.bf16.mxu0 0
  %600 = vmatpush1.bf16.msra.mxu0 0
  %601 = vmatprep.subr.bf16.mxu0 0
  %602 = vmatpush1.bf16.msra.mxu0 0
  %603 = vmatprep.subr.bf16.mxu0 0
  %604 = vmatpush1.bf16.msra.mxu0 0
  %605 = vmatprep.mubr.bf16.mxu0 0
  %606 = vmatmul.mubr.bf16.gmra.mrb[0].mxu0 %v572
  %v607 = vpop.f32.mrb[0].mxu0
  %v608 = vadd.f32 0.0, %v607
  %v609 = vpop.f32.mrb[0].mxu0
  %v610 = vadd.f32 0.0, %v609
  %v611 = vpop.f32.mrb[0].mxu0
  %v612 = vpop.f32.mrb[0].mxu0
  %613 = vdwg.mxu0
  %614 = vmatprep.subr.bf16.mxu0 %v167
  %615 = vmatpush1.bf16.msra.mxu0 %v166
  %616 = vmatprep.subr.bf16.mxu0 %v171
  %617 = vmatpush1.bf16.msra.mxu0 %v170
  %618 = vmatprep.subr.bf16.mxu0 %v175
  %619 = vmatpush1.bf16.msra.mxu0 %v174
  %620 = vmatprep.subr.bf16.mxu0 %v179
  %621 = vmatpush1.bf16.msra.mxu0 %v178
  %622 = vmatprep.subr.bf16.mxu0 %v183
  %623 = vmatpush1.bf16.msra.mxu0 %v182
  %624 = vmatprep.subr.bf16.mxu0 %v187
  %625 = vmatpush1.bf16.msra.mxu0 %v186
  %626 = vmatprep.subr.bf16.mxu0 %v191
  %627 = vmatpush1.bf16.msra.mxu0 %v190
  %628 = vmatprep.subr.bf16.mxu0 %v195
  %629 = vmatpush1.bf16.msra.mxu0 %v194
  %630 = vmatprep.subr.bf16.mxu0 0
  %631 = vmatpush1.bf16.msra.mxu0 0
  %632 = vmatprep.subr.bf16.mxu0 0
  %633 = vmatpush1.bf16.msra.mxu0 0
  %634 = vmatprep.subr.bf16.mxu0 0
  %635 = vmatpush1.bf16.msra.mxu0 0
  %636 = vmatprep.subr.bf16.mxu0 0
  %637 = vmatpush1.bf16.msra.mxu0 0
  %638 = vmatprep.subr.bf16.mxu0 0
  %639 = vmatpush1.bf16.msra.mxu0 0
  %640 = vmatprep.subr.bf16.mxu0 0
  %641 = vmatpush1.bf16.msra.mxu0 0
  %642 = vmatprep.subr.bf16.mxu0 0
  %643 = vmatpush1.bf16.msra.mxu0 0
  %644 = vmatprep.subr.bf16.mxu0 0
  %645 = vmatpush1.bf16.msra.mxu0 0
  %646 = vmatprep.mubr.bf16.mxu0 0
  %647 = vmatmul.mubr.bf16.gmra.mrb[0].mxu0 %v572
  %v648 = vpop.f32.mrb[0].mxu0
  %v649 = vadd.f32 0.0, %v648
  %v650 = vpop.f32.mrb[0].mxu0
  %v651 = vadd.f32 0.0, %v650
  %v652 = vpop.f32.mrb[0].mxu0
  %v653 = vpop.f32.mrb[0].mxu0
  %654 = vdwg.mxu0
  %v655 = vadd.f32 %v568, %v608
  %v656 = vadd.f32 %v569, %v610
  %v657 = vadd.f32 %v570, %v649
  %v658 = vadd.f32 %v571, %v651
  %v659 = vsub.f32 0.0, %v655
  %v660 = vsub.f32 0.0, %v656
  %v661 = vsub.f32 0.0, %v657
  %v662 = vmul.f32 %v659, 1.442695
  %v663 = vpow.pop %v662
  %v664 = vmul.f32 %v660, 1.442695
  %v665 = vpow.pop %v664
  %v666 = vmul.f32 %v661, 1.442695
  %v667 = vpow.pop %v666
  %v668 = vadd.f32 %v663, 1.0
  %v669 = vadd.f32 %v665, 1.0
  %v670 = vadd.f32 %v667, 1.0
  %v671 = vrcp.pop %v668
  %v672 = vrcp.pop %v669
  %v673 = vrcp.pop %v670
  %v674 = vtanh.pop %v658
  %v675 = vmul.f32 %v672, %v562
  %v676 = vmul.f32 %v671, %v674
  %v677 = vadd.f32 %v675, %v676
  %v678 = vtanh.pop %v677
  %v679 = vmul.f32 %v673, %v678
  %s680 = scalar_lea.vmem %s0, 64
  %v681 = vld [vmem:[%s680] sm:$0xff]
  %v682 = vld [vmem:[%s680 + $0x8] sm:$0xff]
  %v683 = vunpack.c.l.bf16 %v681
  %v684 = vunpack.c.h.bf16 %v681
  %v685 = vunpack.c.l.bf16 %v682
  %v686 = vunpack.c.h.bf16 %v682
  %v687 = vpack.c.bf16 %v679, %v679
  %688 = vmatprep.subr.bf16.mxu0 %v165
  %689 = vmatpush1.bf16.msra.mxu0 %v164
  %690 = vmatprep.subr.bf16.mxu0 %v169
  %691 = vmatpush1.bf16.msra.mxu0 %v168
  %692 = vmatprep.subr.bf16.mxu0 %v173
  %693 = vmatpush1.bf16.msra.mxu0 %v172
  %694 = vmatprep.subr.bf16.mxu0 %v177
  %695 = vmatpush1.bf16.msra.mxu0 %v176
  %696 = vmatprep.subr.bf16.mxu0 %v181
  %697 = vmatpush1.bf16.msra.mxu0 %v180
  %698 = vmatprep.subr.bf16.mxu0 %v185
  %699 = vmatpush1.bf16.msra.mxu0 %v184
  %700 = vmatprep.subr.bf16.mxu0 %v189
  %701 = vmatpush1.bf16.msra.mxu0 %v188
  %702 = vmatprep.subr.bf16.mxu0 %v193
  %703 = vmatpush1.bf16.msra.mxu0 %v192
  %704 = vmatprep.subr.bf16.mxu0 0
  %705 = vmatpush1.bf16.msra.mxu0 0
  %706 = vmatprep.subr.bf16.mxu0 0
  %707 = vmatpush1.bf16.msra.mxu0 0
  %708 = vmatprep.subr.bf16.mxu0 0
  %709 = vmatpush1.bf16.msra.mxu0 0
  %710 = vmatprep.subr.bf16.mxu0 0
  %711 = vmatpush1.bf16.msra.mxu0 0
  %712 = vmatprep.subr.bf16.mxu0 0
  %713 = vmatpush1.bf16.msra.mxu0 0
  %714 = vmatprep.subr.bf16.mxu0 0
  %715 = vmatpush1.bf16.msra.mxu0 0
  %716 = vmatprep.subr.bf16.mxu0 0
  %717 = vmatpush1.bf16.msra.mxu0 0
  %718 = vmatprep.subr.bf16.mxu0 0
  %719 = vmatpush1.bf16.msra.mxu0 0
  %720 = vmatprep.mubr.bf16.mxu0 0
  %721 = vmatmul.mubr.bf16.gmra.mrb[0].mxu0 %v687
  %v722 = vpop.f32.mrb[0].mxu0
  %v723 = vadd.f32 0.0, %v722
  %v724 = vpop.f32.mrb[0].mxu0
  %v725 = vadd.f32 0.0, %v724
  %v726 = vpop.f32.mrb[0].mxu0
  %v727 = vpop.f32.mrb[0].mxu0
  %728 = vdwg.mxu0
  %729 = vmatprep.subr.bf16.mxu0 %v167
  %730 = vmatpush1.bf16.msra.mxu0 %v166
  %731 = vmatprep.subr.bf16.mxu0 %v171
  %732 = vmatpush1.bf16.msra.mxu0 %v170
  %733 = vmatprep.subr.bf16.mxu0 %v175
  %734 = vmatpush1.bf16.msra.mxu0 %v174
  %735 = vmatprep.subr.bf16.mxu0 %v179
  %736 = vmatpush1.bf16.msra.mxu0 %v178
  %737 = vmatprep.subr.bf16.mxu0 %v183
  %738 = vmatpush1.bf16.msra.mxu0 %v182
  %739 = vmatprep.subr.bf16.mxu0 %v187
  %740 = vmatpush1.bf16.msra.mxu0 %v186
  %741 = vmatprep.subr.bf16.mxu0 %v191
  %742 = vmatpush1.bf16.msra.mxu0 %v190
  %743 = vmatprep.subr.bf16.mxu0 %v195
  %744 = vmatpush1.bf16.msra.mxu0 %v194
  %745 = vmatprep.subr.bf16.mxu0 0
  %746 = vmatpush1.bf16.msra.mxu0 0
  %747 = vmatprep.subr.bf16.mxu0 0
  %748 = vmatpush1.bf16.msra.mxu0 0
  %749 = vmatprep.subr.bf16.mxu0 0
  %750 = vmatpush1.bf16.msra.mxu0 0
  %751 = vmatprep.subr.bf16.mxu0 0
  %752 = vmatpush1.bf16.msra.mxu0 0
  %753 = vmatprep.subr.bf16.mxu0 0
  %754 = vmatpush1.bf16.msra.mxu0 0
  %755 = vmatprep.subr.bf16.mxu0 0
  %756 = vmatpush1.bf16.msra.mxu0 0
  %757 = vmatprep.subr.bf16.mxu0 0
  %758 = vmatpush1.bf16.msra.mxu0 0
  %759 = vmatprep.subr.bf16.mxu0 0
  %760 = vmatpush1.bf16.msra.mxu0 0
  %761 = vmatprep.mubr.bf16.mxu0 0
  %762 = vmatmul.mubr.bf16.gmra.mrb[0].mxu0 %v687
  %v763 = vpop.f32.mrb[0].mxu0
  %v764 = vadd.f32 0.0, %v763
  %v765 = vpop.f32.mrb[0].mxu0
  %v766 = vadd.f32 0.0, %v765
  %v767 = vpop.f32.mrb[0].mxu0
  %v768 = vpop.f32.mrb[0].mxu0
  %769 = vdwg.mxu0
  %v770 = vadd.f32 %v683, %v723
  %v771 = vadd.f32 %v684, %v725
  %v772 = vadd.f32 %v685, %v764
  %v773 = vadd.f32 %v686, %v766
  %v774 = vsub.f32 0.0, %v770
  %v775 = vsub.f32 0.0, %v771
  %v776 = vsub.f32 0.0, %v772
  %v777 = vmul.f32 %v774, 1.442695
  %v778 = vpow.pop %v777
  %v779 = vmul.f32 %v775, 1.442695
  %v780 = vpow.pop %v779
  %v781 = vmul.f32 %v776, 1.442695
  %v782 = vpow.pop %v781
  %v783 = vadd.f32 %v778, 1.0
  %v784 = vadd.f32 %v780, 1.0
  %v785 = vadd.f32 %v782, 1.0
  %v786 = vrcp.pop %v783
  %v787 = vrcp.pop %v784
  %v788 = vrcp.pop %v785
  %v789 = vtanh.pop %v773
  %v790 = vmul.f32 %v787, %v677
  %v791 = vmul.f32 %v786, %v789
  %v792 = vadd.f32 %v790, %v791
  %v793 = vtanh.pop %v792
  %v794 = vmul.f32 %v788, %v793
  %s795 = scalar_lea.vmem %s0, 80
  %v796 = vld [vmem:[%s795] sm:$0xff]
  %v797 = vld [vmem:[%s795 + $0x8] sm:$0xff]
  %v798 = vunpack.c.l.bf16 %v796
  %v799 = vunpack.c.h.bf16 %v796
  %v800 = vunpack.c.l.bf16 %v797
  %v801 = vunpack.c.h.bf16 %v797
  %v802 = vpack.c.bf16 %v794, %v794
  %803 = vmatprep.subr.bf16.mxu0 %v165
  %804 = vmatpush1.bf16.msra.mxu0 %v164
  %805 = vmatprep.subr.bf16.mxu0 %v169
  %806 = vmatpush1.bf16.msra.mxu0 %v168
  %807 = vmatprep.subr.bf16.mxu0 %v173
  %808 = vmatpush1.bf16.msra.mxu0 %v172
  %809 = vmatprep.subr.bf16.mxu0 %v177
  %810 = vmatpush1.bf16.msra.mxu0 %v176
  %811 = vmatprep.subr.bf16.mxu0 %v181
  %812 = vmatpush1.bf16.msra.mxu0 %v180
  %813 = vmatprep.subr.bf16.mxu0 %v185
  %814 = vmatpush1.bf16.msra.mxu0 %v184
  %815 = vmatprep.subr.bf16.mxu0 %v189
  %816 = vmatpush1.bf16.msra.mxu0 %v188
  %817 = vmatprep.subr.bf16.mxu0 %v193
  %818 = vmatpush1.bf16.msra.mxu0 %v192
  %819 = vmatprep.subr.bf16.mxu0 0
  %820 = vmatpush1.bf16.msra.mxu0 0
  %821 = vmatprep.subr.bf16.mxu0 0
  %822 = vmatpush1.bf16.msra.mxu0 0
  %823 = vmatprep.subr.bf16.mxu0 0
  %824 = vmatpush1.bf16.msra.mxu0 0
  %825 = vmatprep.subr.bf16.mxu0 0
  %826 = vmatpush1.bf16.msra.mxu0 0
  %827 = vmatprep.subr.bf16.mxu0 0
  %828 = vmatpush1.bf16.msra.mxu0 0
  %829 = vmatprep.subr.bf16.mxu0 0
  %830 = vmatpush1.bf16.msra.mxu0 0
  %831 = vmatprep.subr.bf16.mxu0 0
  %832 = vmatpush1.bf16.msra.mxu0 0
  %833 = vmatprep.subr.bf16.mxu0 0
  %834 = vmatpush1.bf16.msra.mxu0 0
  %835 = vmatprep.mubr.bf16.mxu0 0
  %836 = vmatmul.mubr.bf16.gmra.mrb[0].mxu0 %v802
  %v837 = vpop.f32.mrb[0].mxu0
  %v838 = vadd.f32 0.0, %v837
  %v839 = vpop.f32.mrb[0].mxu0
  %v840 = vadd.f32 0.0, %v839
  %v841 = vpop.f32.mrb[0].mxu0
  %v842 = vpop.f32.mrb[0].mxu0
  %843 = vdwg.mxu0
  %844 = vmatprep.subr.bf16.mxu0 %v167
  %845 = vmatpush1.bf16.msra.mxu0 %v166
  %846 = vmatprep.subr.bf16.mxu0 %v171
  %847 = vmatpush1.bf16.msra.mxu0 %v170
  %848 = vmatprep.subr.bf16.mxu0 %v175
  %849 = vmatpush1.bf16.msra.mxu0 %v174
  %850 = vmatprep.subr.bf16.mxu0 %v179
  %851 = vmatpush1.bf16.msra.mxu0 %v178
  %852 = vmatprep.subr.bf16.mxu0 %v183
  %853 = vmatpush1.bf16.msra.mxu0 %v182
  %854 = vmatprep.subr.bf16.mxu0 %v187
  %855 = vmatpush1.bf16.msra.mxu0 %v186
  %856 = vmatprep.subr.bf16.mxu0 %v191
  %857 = vmatpush1.bf16.msra.mxu0 %v190
  %858 = vmatprep.subr.bf16.mxu0 %v195
  %859 = vmatpush1.bf16.msra.mxu0 %v194
  %860 = vmatprep.subr.bf16.mxu0 0
  %861 = vmatpush1.bf16.msra.mxu0 0
  %862 = vmatprep.subr.bf16.mxu0 0
  %863 = vmatpush1.bf16.msra.mxu0 0
  %864 = vmatprep.subr.bf16.mxu0 0
  %865 = vmatpush1.bf16.msra.mxu0 0
  %866 = vmatprep.subr.bf16.mxu0 0
  %867 = vmatpush1.bf16.msra.mxu0 0
  %868 = vmatprep.subr.bf16.mxu0 0
  %869 = vmatpush1.bf16.msra.mxu0 0
  %870 = vmatprep.subr.bf16.mxu0 0
  %871 = vmatpush1.bf16.msra.mxu0 0
  %872 = vmatprep.subr.bf16.mxu0 0
  %873 = vmatpush1.bf16.msra.mxu0 0
  %874 = vmatprep.subr.bf16.mxu0 0
  %875 = vmatpush1.bf16.msra.mxu0 0
  %876 = vmatprep.mubr.bf16.mxu0 0
  %877 = vmatmul.mubr.bf16.gmra.mrb[0].mxu0 %v802
  %v878 = vpop.f32.mrb[0].mxu0
  %v879 = vadd.f32 0.0, %v878
  %v880 = vpop.f32.mrb[0].mxu0
  %v881 = vadd.f32 0.0, %v880
  %v882 = vpop.f32.mrb[0].mxu0
  %v883 = vpop.f32.mrb[0].mxu0
  %884 = vdwg.mxu0
  %v885 = vadd.f32 %v798, %v838
  %v886 = vadd.f32 %v799, %v840
  %v887 = vadd.f32 %v800, %v879
  %v888 = vadd.f32 %v801, %v881
  %v889 = vsub.f32 0.0, %v885
  %v890 = vsub.f32 0.0, %v886
  %v891 = vsub.f32 0.0, %v887
  %v892 = vmul.f32 %v889, 1.442695
  %v893 = vpow.pop %v892
  %v894 = vmul.f32 %v890, 1.442695
  %v895 = vpow.pop %v894
  %v896 = vmul.f32 %v891, 1.442695
  %v897 = vpow.pop %v896
  %v898 = vadd.f32 %v893, 1.0
  %v899 = vadd.f32 %v895, 1.0
  %v900 = vadd.f32 %v897, 1.0
  %v901 = vrcp.pop %v898
  %v902 = vrcp.pop %v899
  %v903 = vrcp.pop %v900
  %v904 = vtanh.pop %v888
  %v905 = vmul.f32 %v902, %v792
  %v906 = vmul.f32 %v901, %v904
  %v907 = vadd.f32 %v905, %v906
  %v908 = vtanh.pop %v907
  %v909 = vmul.f32 %v903, %v908
  %s910 = scalar_lea.vmem %s0, 96
  %v911 = vld [vmem:[%s910] sm:$0xff]
  %v912 = vld [vmem:[%s910 + $0x8] sm:$0xff]
  %v913 = vunpack.c.l.bf16 %v911
  %v914 = vunpack.c.h.bf16 %v911
  %v915 = vunpack.c.l.bf16 %v912
  %v916 = vunpack.c.h.bf16 %v912
  %v917 = vpack.c.bf16 %v909, %v909
  %918 = vmatprep.subr.bf16.mxu0 %v165
  %919 = vmatpush1.bf16.msra.mxu0 %v164
  %920 = vmatprep.subr.bf16.mxu0 %v169
  %921 = vmatpush1.bf16.msra.mxu0 %v168
  %922 = vmatprep.subr.bf16.mxu0 %v173
  %923 = vmatpush1.bf16.msra.mxu0 %v172
  %924 = vmatprep.subr.bf16.mxu0 %v177
  %925 = vmatpush1.bf16.msra.mxu0 %v176
  %926 = vmatprep.subr.bf16.mxu0 %v181
  %927 = vmatpush1.bf16.msra.mxu0 %v180
  %928 = vmatprep.subr.bf16.mxu0 %v185
  %929 = vmatpush1.bf16.msra.mxu0 %v184
  %930 = vmatprep.subr.bf16.mxu0 %v189
  %931 = vmatpush1.bf16.msra.mxu0 %v188
  %932 = vmatprep.subr.bf16.mxu0 %v193
  %933 = vmatpush1.bf16.msra.mxu0 %v192
  %934 = vmatprep.subr.bf16.mxu0 0
  %935 = vmatpush1.bf16.msra.mxu0 0
  %936 = vmatprep.subr.bf16.mxu0 0
  %937 = vmatpush1.bf16.msra.mxu0 0
  %938 = vmatprep.subr.bf16.mxu0 0
  %939 = vmatpush1.bf16.msra.mxu0 0
  %940 = vmatprep.subr.bf16.mxu0 0
  %941 = vmatpush1.bf16.msra.mxu0 0
  %942 = vmatprep.subr.bf16.mxu0 0
  %943 = vmatpush1.bf16.msra.mxu0 0
  %944 = vmatprep.subr.bf16.mxu0 0
  %945 = vmatpush1.bf16.msra.mxu0 0
  %946 = vmatprep.subr.bf16.mxu0 0
  %947 = vmatpush1.bf16.msra.mxu0 0
  %948 = vmatprep.subr.bf16.mxu0 0
  %949 = vmatpush1.bf16.msra.mxu0 0
  %950 = vmatprep.mubr.bf16.mxu0 0
  %951 = vmatmul.mubr.bf16.gmra.mrb[0].mxu0 %v917
  %v952 = vpop.f32.mrb[0].mxu0
  %v953 = vadd.f32 0.0, %v952
  %v954 = vpop.f32.mrb[0].mxu0
  %v955 = vadd.f32 0.0, %v954
  %v956 = vpop.f32.mrb[0].mxu0
  %v957 = vpop.f32.mrb[0].mxu0
  %958 = vdwg.mxu0
  %959 = vmatprep.subr.bf16.mxu0 %v167
  %960 = vmatpush1.bf16.msra.mxu0 %v166
  %961 = vmatprep.subr.bf16.mxu0 %v171
  %962 = vmatpush1.bf16.msra.mxu0 %v170
  %963 = vmatprep.subr.bf16.mxu0 %v175
  %964 = vmatpush1.bf16.msra.mxu0 %v174
  %965 = vmatprep.subr.bf16.mxu0 %v179
  %966 = vmatpush1.bf16.msra.mxu0 %v178
  %967 = vmatprep.subr.bf16.mxu0 %v183
  %968 = vmatpush1.bf16.msra.mxu0 %v182
  %969 = vmatprep.subr.bf16.mxu0 %v187
  %970 = vmatpush1.bf16.msra.mxu0 %v186
  %971 = vmatprep.subr.bf16.mxu0 %v191
  %972 = vmatpush1.bf16.msra.mxu0 %v190
  %973 = vmatprep.subr.bf16.mxu0 %v195
  %974 = vmatpush1.bf16.msra.mxu0 %v194
  %975 = vmatprep.subr.bf16.mxu0 0
  %976 = vmatpush1.bf16.msra.mxu0 0
  %977 = vmatprep.subr.bf16.mxu0 0
  %978 = vmatpush1.bf16.msra.mxu0 0
  %979 = vmatprep.subr.bf16.mxu0 0
  %980 = vmatpush1.bf16.msra.mxu0 0
  %981 = vmatprep.subr.bf16.mxu0 0
  %982 = vmatpush1.bf16.msra.mxu0 0
  %983 = vmatprep.subr.bf16.mxu0 0
  %984 = vmatpush1.bf16.msra.mxu0 0
  %985 = vmatprep.subr.bf16.mxu0 0
  %986 = vmatpush1.bf16.msra.mxu0 0
  %987 = vmatprep.subr.bf16.mxu0 0
  %988 = vmatpush1.bf16.msra.mxu0 0
  %989 = vmatprep.subr.bf16.mxu0 0
  %990 = vmatpush1.bf16.msra.mxu0 0
  %991 = vmatprep.mubr.bf16.mxu0 0
  %992 = vmatmul.mubr.bf16.gmra.mrb[0].mxu0 %v917
  %v993 = vpop.f32.mrb[0].mxu0
  %v994 = vadd.f32 0.0, %v993
  %v995 = vpop.f32.mrb[0].mxu0
  %v996 = vadd.f32 0.0, %v995
  %v997 = vpop.f32.mrb[0].mxu0
  %v998 = vpop.f32.mrb[0].mxu0
  %999 = vdwg.mxu0
  %v1000 = vadd.f32 %v913, %v953
  %v1001 = vadd.f32 %v914, %v955
  %v1002 = vadd.f32 %v915, %v994
  %v1003 = vadd.f32 %v916, %v996
  %v1004 = vsub.f32 0.0, %v1000
  %v1005 = vsub.f32 0.0, %v1001
  %v1006 = vsub.f32 0.0, %v1002
  %v1007 = vmul.f32 %v1004, 1.442695
  %v1008 = vpow.pop %v1007
  %v1009 = vmul.f32 %v1005, 1.442695
  %v1010 = vpow.pop %v1009
  %v1011 = vmul.f32 %v1006, 1.442695
  %v1012 = vpow.pop %v1011
  %v1013 = vadd.f32 %v1008, 1.0
  %v1014 = vadd.f32 %v1010, 1.0
  %v1015 = vadd.f32 %v1012, 1.0
  %v1016 = vrcp.pop %v1013
  %v1017 = vrcp.pop %v1014
  %v1018 = vrcp.pop %v1015
  %v1019 = vtanh.pop %v1003
  %v1020 = vmul.f32 %v1017, %v907
  %v1021 = vmul.f32 %v1016, %v1019
  %v1022 = vadd.f32 %v1020, %v1021
  %v1023 = vtanh.pop %v1022
  %v1024 = vmul.f32 %v1018, %v1023
  %s1025 = scalar_lea.vmem %s0, 112
  %v1026 = vld [vmem:[%s1025] sm:$0xff]
  %v1027 = vld [vmem:[%s1025 + $0x8] sm:$0xff]
  %v1028 = vunpack.c.l.bf16 %v1026
  %v1029 = vunpack.c.h.bf16 %v1026
  %v1030 = vunpack.c.l.bf16 %v1027
  %v1031 = vunpack.c.h.bf16 %v1027
  %v1032 = vpack.c.bf16 %v1024, %v1024
  %1033 = vmatprep.subr.bf16.mxu0 %v165
  %1034 = vmatpush1.bf16.msra.mxu0 %v164
  %1035 = vmatprep.subr.bf16.mxu0 %v169
  %1036 = vmatpush1.bf16.msra.mxu0 %v168
  %1037 = vmatprep.subr.bf16.mxu0 %v173
  %1038 = vmatpush1.bf16.msra.mxu0 %v172
  %1039 = vmatprep.subr.bf16.mxu0 %v177
  %1040 = vmatpush1.bf16.msra.mxu0 %v176
  %1041 = vmatprep.subr.bf16.mxu0 %v181
  %1042 = vmatpush1.bf16.msra.mxu0 %v180
  %1043 = vmatprep.subr.bf16.mxu0 %v185
  %1044 = vmatpush1.bf16.msra.mxu0 %v184
  %1045 = vmatprep.subr.bf16.mxu0 %v189
  %1046 = vmatpush1.bf16.msra.mxu0 %v188
  %1047 = vmatprep.subr.bf16.mxu0 %v193
  %1048 = vmatpush1.bf16.msra.mxu0 %v192
  %1049 = vmatprep.subr.bf16.mxu0 0
  %1050 = vmatpush1.bf16.msra.mxu0 0
  %1051 = vmatprep.subr.bf16.mxu0 0
  %1052 = vmatpush1.bf16.msra.mxu0 0
  %1053 = vmatprep.subr.bf16.mxu0 0
  %1054 = vmatpush1.bf16.msra.mxu0 0
  %1055 = vmatprep.subr.bf16.mxu0 0
  %1056 = vmatpush1.bf16.msra.mxu0 0
  %1057 = vmatprep.subr.bf16.mxu0 0
  %1058 = vmatpush1.bf16.msra.mxu0 0
  %1059 = vmatprep.subr.bf16.mxu0 0
  %1060 = vmatpush1.bf16.msra.mxu0 0
  %1061 = vmatprep.subr.bf16.mxu0 0
  %1062 = vmatpush1.bf16.msra.mxu0 0
  %1063 = vmatprep.subr.bf16.mxu0 0
  %1064 = vmatpush1.bf16.msra.mxu0 0
  %1065 = vmatprep.mubr.bf16.mxu0 0
  %1066 = vmatmul.mubr.bf16.gmra.mrb[0].mxu0 %v1032
  %v1067 = vpop.f32.mrb[0].mxu0
  %v1068 = vadd.f32 0.0, %v1067
  %v1069 = vpop.f32.mrb[0].mxu0
  %v1070 = vadd.f32 0.0, %v1069
  %v1071 = vpop.f32.mrb[0].mxu0
  %v1072 = vpop.f32.mrb[0].mxu0
  %1073 = vdwg.mxu0
  %1074 = vmatprep.subr.bf16.mxu0 %v167
  %1075 = vmatpush1.bf16.msra.mxu0 %v166
  %1076 = vmatprep.subr.bf16.mxu0 %v171
  %1077 = vmatpush1.bf16.msra.mxu0 %v170
  %1078 = vmatprep.subr.bf16.mxu0 %v175
  %1079 = vmatpush1.bf16.msra.mxu0 %v174
  %1080 = vmatprep.subr.bf16.mxu0 %v179
  %1081 = vmatpush1.bf16.msra.mxu0 %v178
  %1082 = vmatprep.subr.bf16.mxu0 %v183
  %1083 = vmatpush1.bf16.msra.mxu0 %v182
  %1084 = vmatprep.subr.bf16.mxu0 %v187
  %1085 = vmatpush1.bf16.msra.mxu0 %v186
  %1086 = vmatprep.subr.bf16.mxu0 %v191
  %1087 = vmatpush1.bf16.msra.mxu0 %v190
  %1088 = vmatprep.subr.bf16.mxu0 %v195
  %1089 = vmatpush1.bf16.msra.mxu0 %v194
  %1090 = vmatprep.subr.bf16.mxu0 0
  %1091 = vmatpush1.bf16.msra.mxu0 0
  %1092 = vmatprep.subr.bf16.mxu0 0
  %1093 = vmatpush1.bf16.msra.mxu0 0
  %1094 = vmatprep.subr.bf16.mxu0 0
  %1095 = vmatpush1.bf16.msra.mxu0 0
  %1096 = vmatprep.subr.bf16.mxu0 0
  %1097 = vmatpush1.bf16.msra.mxu0 0
  %1098 = vmatprep.subr.bf16.mxu0 0
  %1099 = vmatpush1.bf16.msra.mxu0 0
  %1100 = vmatprep.subr.bf16.mxu0 0
  %1101 = vmatpush1.bf16.msra.mxu0 0
  %1102 = vmatprep.subr.bf16.mxu0 0
  %1103 = vmatpush1.bf16.msra.mxu0 0
  %1104 = vmatprep.subr.bf16.mxu0 0
  %1105 = vmatpush1.bf16.msra.mxu0 0
  %1106 = vmatprep.mubr.bf16.mxu0 0
  %1107 = vmatmul.mubr.bf16.gmra.mrb[0].mxu0 %v1032
  %v1108 = vpop.f32.mrb[0].mxu0
  %v1109 = vadd.f32 0.0, %v1108
  %v1110 = vpop.f32.mrb[0].mxu0
  %v1111 = vadd.f32 0.0, %v1110
  %v1112 = vpop.f32.mrb[0].mxu0
  %v1113 = vpop.f32.mrb[0].mxu0
  %1114 = vdwg.mxu0
  %v1115 = vadd.f32 %v1028, %v1068
  %v1116 = vadd.f32 %v1029, %v1070
  %v1117 = vadd.f32 %v1030, %v1109
  %v1118 = vadd.f32 %v1031, %v1111
  %v1119 = vsub.f32 0.0, %v1115
  %v1120 = vsub.f32 0.0, %v1116
  %v1121 = vsub.f32 0.0, %v1117
  %v1122 = vmul.f32 %v1119, 1.442695
  %v1123 = vpow.pop %v1122
  %v1124 = vmul.f32 %v1120, 1.442695
  %v1125 = vpow.pop %v1124
  %v1126 = vmul.f32 %v1121, 1.442695
  %v1127 = vpow.pop %v1126
  %v1128 = vadd.f32 %v1123, 1.0
  %v1129 = vadd.f32 %v1125, 1.0
  %v1130 = vadd.f32 %v1127, 1.0
  %v1131 = vrcp.pop %v1128
  %v1132 = vrcp.pop %v1129
  %v1133 = vrcp.pop %v1130
  %v1134 = vtanh.pop %v1118
  %v1135 = vmul.f32 %v1132, %v1022
  %v1136 = vmul.f32 %v1131, %v1134
  %v1137 = vadd.f32 %v1135, %v1136
  %v1138 = vtanh.pop %v1137
  %v1139 = vmul.f32 %v1133, %v1138
  %v1140 = vld [vmem:[%s2] sm:$0xff]
  %v1141 = vld [vmem:[%s2 + $0x8] sm:$0xff]
  %v1142 = vld [vmem:[%s2 + $0x10] sm:$0xff]
  %v1143 = vld [vmem:[%s2 + $0x18] sm:$0xff]
  %v1144 = vld [vmem:[%s2 + $0x20] sm:$0xff]
  %v1145 = vld [vmem:[%s2 + $0x28] sm:$0xff]
  %v1146 = vld [vmem:[%s2 + $0x30] sm:$0xff]
  %v1147 = vld [vmem:[%s2 + $0x38] sm:$0xff]
  %v1148 = vld [vmem:[%s2 + $0x40] sm:$0xff]
  %v1149 = vld [vmem:[%s2 + $0x48] sm:$0xff]
  %v1150 = vld [vmem:[%s2 + $0x50] sm:$0xff]
  %v1151 = vld [vmem:[%s2 + $0x58] sm:$0xff]
  %v1152 = vld [vmem:[%s2 + $0x60] sm:$0xff]
  %v1153 = vld [vmem:[%s2 + $0x68] sm:$0xff]
  %v1154 = vld [vmem:[%s2 + $0x70] sm:$0xff]
  %v1155 = vld [vmem:[%s2 + $0x78] sm:$0xff]
  %v1156 = vld [vmem:[%s3] sm:$0x1]
  %v1158 = vlaneseq
  %v1159 = vshrl.u32 %v1158, 7
  %v1160 = vsub.s32 0, %v1159
  %v1161 = vrot.slane %v1156, %v1160
  %1163 = vmatprep.subr.mxu0 0.0
  %1164 = vmatpush1.msra.mxu0 %v1140
  %1165 = vmatprep.subr.mxu0 0.0
  %1166 = vmatpush1.msra.mxu0 %v1141
  %1167 = vmatprep.subr.mxu0 0.0
  %1168 = vmatpush1.msra.mxu0 %v1142
  %1169 = vmatprep.subr.mxu0 0.0
  %1170 = vmatpush1.msra.mxu0 %v1143
  %1171 = vmatprep.subr.mxu0 0.0
  %1172 = vmatpush1.msra.mxu0 %v1144
  %1173 = vmatprep.subr.mxu0 0.0
  %1174 = vmatpush1.msra.mxu0 %v1145
  %1175 = vmatprep.subr.mxu0 0.0
  %1176 = vmatpush1.msra.mxu0 %v1146
  %1177 = vmatprep.subr.mxu0 0.0
  %1178 = vmatpush1.msra.mxu0 %v1147
  %1179 = vmatprep.subr.mxu0 0.0
  %1180 = vmatpush1.msra.mxu0 %v1148
  %1181 = vmatprep.subr.mxu0 0.0
  %1182 = vmatpush1.msra.mxu0 %v1149
  %1183 = vmatprep.subr.mxu0 0.0
  %1184 = vmatpush1.msra.mxu0 %v1150
  %1185 = vmatprep.subr.mxu0 0.0
  %1186 = vmatpush1.msra.mxu0 %v1151
  %1187 = vmatprep.subr.mxu0 0.0
  %1188 = vmatpush1.msra.mxu0 %v1152
  %1189 = vmatprep.subr.mxu0 0.0
  %1190 = vmatpush1.msra.mxu0 %v1153
  %1191 = vmatprep.subr.mxu0 0.0
  %1192 = vmatpush1.msra.mxu0 %v1154
  %1193 = vmatprep.subr.mxu0 0.0
  %1194 = vmatpush1.msra.mxu0 %v1155
  %1195 = vmatprep.subr.mxu0 0.0
  %1196 = vmatpush1.msra.mxu0 0.0
  %1197 = vmatprep.subr.mxu0 0.0
  %1198 = vmatpush1.msra.mxu0 0.0
  %1199 = vmatprep.subr.mxu0 0.0
  %1200 = vmatpush1.msra.mxu0 0.0
  %1201 = vmatprep.subr.mxu0 0.0
  %1202 = vmatpush1.msra.mxu0 0.0
  %1203 = vmatprep.subr.mxu0 0.0
  %1204 = vmatpush1.msra.mxu0 0.0
  %1205 = vmatprep.subr.mxu0 0.0
  %1206 = vmatpush1.msra.mxu0 0.0
  %1207 = vmatprep.subr.mxu0 0.0
  %1208 = vmatpush1.msra.mxu0 0.0
  %1209 = vmatprep.subr.mxu0 0.0
  %1210 = vmatpush1.msra.mxu0 0.0
  %1211 = vmatprep.subr.mxu0 0.0
  %1212 = vmatpush1.msra.mxu0 0.0
  %1213 = vmatprep.subr.mxu0 0.0
  %1214 = vmatpush1.msra.mxu0 0.0
  %1215 = vmatprep.subr.mxu0 0.0
  %1216 = vmatpush1.msra.mxu0 0.0
  %1217 = vmatprep.subr.mxu0 0.0
  %1218 = vmatpush1.msra.mxu0 0.0
  %1219 = vmatprep.subr.mxu0 0.0
  %1220 = vmatpush1.msra.mxu0 0.0
  %1221 = vmatprep.subr.mxu0 0.0
  %1222 = vmatpush1.msra.mxu0 0.0
  %1223 = vmatprep.subr.mxu0 0.0
  %1224 = vmatpush1.msra.mxu0 0.0
  %1225 = vmatprep.subr.mxu0 0.0
  %1226 = vmatpush1.msra.mxu0 0.0
  %1227 = vmatprep.mubr.f32.mxu0 0.0
  %1228 = vmatmul.mubr.f32.gmra.mrb[0].mxu0 %v1139
  %v1229 = vpop.f32.mrb[0].mxu0
  %v1230 = vadd.f32 %v1161, %v1229
  %v1231 = vpop.f32.mrb[0].mxu0
  %1232 = vdwg.mxu0
  %v1233 = vmax.f32 %v1230, 0.0
  %v1234 = vrot.slane %v1233, 4
  %v1235 = vadd.f32 %v1233, %v1234
  %v1236 = vrot.slane %v1235, 2
  %v1237 = vadd.f32 %v1235, %v1236
  %v1238 = vrot.slane %v1237, 1
  %v1239 = vadd.f32 %v1237, %v1238
  %v1240 = vrcp.pop 8.0
  %v1241 = vmul.f32 %v1239, %v1240
  %v1242 = vsub.f32 %v1233, %v1241
  %v1243 = vmul.f32 %v1242, %v1242
  %v1244 = vrot.slane %v1243, 4
  %v1245 = vadd.f32 %v1243, %v1244
  %v1246 = vrot.slane %v1245, 2
  %v1247 = vadd.f32 %v1245, %v1246
  %v1248 = vrot.slane %v1247, 1
  %v1249 = vadd.f32 %v1247, %v1248
  %v1250 = vmul.f32 %v1249, %v1240
  %v1251 = vld [vmem:[%s4] sm:$0x1]
  %v1253 = vlaneseq
  %v1254 = vshrl.u32 %v1253, 7
  %v1255 = vsub.s32 0, %v1254
  %v1256 = vrot.slane %v1251, %v1255
  %v1258 = vmul.f32 %v1256, %v1242
  %v1259 = vadd.f32 %v1250, 1e-05
  %v1260 = vrsqrt.pop %v1259
  %v1261 = vmul.f32 %v1258, %v1260
  %v1262 = vld [vmem:[%s5] sm:$0x1]
  %v1264 = vlaneseq
  %v1265 = vshrl.u32 %v1264, 7
  %v1266 = vsub.s32 0, %v1265
  %v1267 = vrot.slane %v1262, %v1266
  %v1269 = vadd.f32 %v1261, %v1267
  %v1270 = vld [vmem:[%s6] sm:$0xff]
  %v1271 = vld [vmem:[%s6 + $0x8] sm:$0xff]
  %v1272 = vld [vmem:[%s6 + $0x10] sm:$0xff]
  %v1273 = vld [vmem:[%s6 + $0x18] sm:$0xff]
  %v1274 = vld [vmem:[%s6 + $0x20] sm:$0xff]
  %v1275 = vld [vmem:[%s6 + $0x28] sm:$0xff]
  %v1276 = vld [vmem:[%s6 + $0x30] sm:$0xff]
  %v1277 = vld [vmem:[%s6 + $0x38] sm:$0xff]
  %v1278 = vld [vmem:[%s6 + $0x40] sm:$0xff]
  %v1279 = vld [vmem:[%s6 + $0x48] sm:$0xff]
  %v1280 = vld [vmem:[%s6 + $0x50] sm:$0xff]
  %v1281 = vld [vmem:[%s6 + $0x58] sm:$0xff]
  %v1282 = vld [vmem:[%s6 + $0x60] sm:$0xff]
  %v1283 = vld [vmem:[%s6 + $0x68] sm:$0xff]
  %v1284 = vld [vmem:[%s6 + $0x70] sm:$0xff]
  %v1285 = vld [vmem:[%s6 + $0x78] sm:$0xff]
  %v1286 = vld [vmem:[%s7] sm:$0x1]
  %v1288 = vlaneseq
  %v1289 = vshrl.u32 %v1288, 7
  %v1290 = vsub.s32 0, %v1289
  %v1291 = vrot.slane %v1286, %v1290
  %1293 = vmatprep.subr.mxu0 0.0
  %1294 = vmatpush1.msra.mxu0 %v1270
  %1295 = vmatprep.subr.mxu0 0.0
  %1296 = vmatpush1.msra.mxu0 %v1271
  %1297 = vmatprep.subr.mxu0 0.0
  %1298 = vmatpush1.msra.mxu0 %v1272
  %1299 = vmatprep.subr.mxu0 0.0
  %1300 = vmatpush1.msra.mxu0 %v1273
  %1301 = vmatprep.subr.mxu0 0.0
  %1302 = vmatpush1.msra.mxu0 %v1274
  %1303 = vmatprep.subr.mxu0 0.0
  %1304 = vmatpush1.msra.mxu0 %v1275
  %1305 = vmatprep.subr.mxu0 0.0
  %1306 = vmatpush1.msra.mxu0 %v1276
  %1307 = vmatprep.subr.mxu0 0.0
  %1308 = vmatpush1.msra.mxu0 %v1277
  %1309 = vmatprep.subr.mxu0 0.0
  %1310 = vmatpush1.msra.mxu0 %v1278
  %1311 = vmatprep.subr.mxu0 0.0
  %1312 = vmatpush1.msra.mxu0 %v1279
  %1313 = vmatprep.subr.mxu0 0.0
  %1314 = vmatpush1.msra.mxu0 %v1280
  %1315 = vmatprep.subr.mxu0 0.0
  %1316 = vmatpush1.msra.mxu0 %v1281
  %1317 = vmatprep.subr.mxu0 0.0
  %1318 = vmatpush1.msra.mxu0 %v1282
  %1319 = vmatprep.subr.mxu0 0.0
  %1320 = vmatpush1.msra.mxu0 %v1283
  %1321 = vmatprep.subr.mxu0 0.0
  %1322 = vmatpush1.msra.mxu0 %v1284
  %1323 = vmatprep.subr.mxu0 0.0
  %1324 = vmatpush1.msra.mxu0 %v1285
  %1325 = vmatprep.subr.mxu0 0.0
  %1326 = vmatpush1.msra.mxu0 0.0
  %1327 = vmatprep.subr.mxu0 0.0
  %1328 = vmatpush1.msra.mxu0 0.0
  %1329 = vmatprep.subr.mxu0 0.0
  %1330 = vmatpush1.msra.mxu0 0.0
  %1331 = vmatprep.subr.mxu0 0.0
  %1332 = vmatpush1.msra.mxu0 0.0
  %1333 = vmatprep.subr.mxu0 0.0
  %1334 = vmatpush1.msra.mxu0 0.0
  %1335 = vmatprep.subr.mxu0 0.0
  %1336 = vmatpush1.msra.mxu0 0.0
  %1337 = vmatprep.subr.mxu0 0.0
  %1338 = vmatpush1.msra.mxu0 0.0
  %1339 = vmatprep.subr.mxu0 0.0
  %1340 = vmatpush1.msra.mxu0 0.0
  %1341 = vmatprep.subr.mxu0 0.0
  %1342 = vmatpush1.msra.mxu0 0.0
  %1343 = vmatprep.subr.mxu0 0.0
  %1344 = vmatpush1.msra.mxu0 0.0
  %1345 = vmatprep.subr.mxu0 0.0
  %1346 = vmatpush1.msra.mxu0 0.0
  %1347 = vmatprep.subr.mxu0 0.0
  %1348 = vmatpush1.msra.mxu0 0.0
  %1349 = vmatprep.subr.mxu0 0.0
  %1350 = vmatpush1.msra.mxu0 0.0
  %1351 = vmatprep.subr.mxu0 0.0
  %1352 = vmatpush1.msra.mxu0 0.0
  %1353 = vmatprep.subr.mxu0 0.0
  %1354 = vmatpush1.msra.mxu0 0.0
  %1355 = vmatprep.subr.mxu0 0.0
  %1356 = vmatpush1.msra.mxu0 0.0
  %1357 = vmatprep.mubr.f32.mxu0 0.0
  %1358 = vmatmul.mubr.f32.gmra.mrb[0].mxu0 %v1269
  %v1359 = vpop.f32.mrb[0].mxu0
  %v1360 = vadd.f32 %v1291, %v1359
  %v1361 = vpop.f32.mrb[0].mxu0
  %1362 = vdwg.mxu0
  %v1363 = vxor.u32 %v1360, 2147483648
  %v1364 = vmul.f32 %v1363, 1.442695
  %v1365 = vpow.pop %v1364
  %v1366 = vadd.f32 %v1365, 1.0
  %v1367 = vrcp.pop %v1366
  %v1368 = vmul.f32 1.0, %v1367
  %1369 = vst [vmem:[%s8] sm:$0xff] %v1368
  // Predicated region
  $region34: #{lstm_module_forward.1} parent=0 // pred_check
    _
  $region35: #{lstm_module_forward.1} parent=0 // pred_check_branch
    %1371 = sbr.rel (0) target = $region37
  $region36: #{lstm_module_forward.1} parent=0 // pred_region
    _
  $region37: #{lstm_module_forward.1} parent=0 // pred_fallthru
    _
  // Predicated region
  $region38: #{lstm_module_forward.1} parent=0 // pred_check
    _
  $region39: #{lstm_module_forward.1} parent=0 // pred_check_branch
    %1373 = sbr.rel (0) target = $region41
  $region40: #{lstm_module_forward.1} parent=0 // pred_region
    _
  $region41: #{lstm_module_forward.1} parent=0 // pred_fallthru
    _

</llo_original>
